<compile_context>
chip_gen: v5e
topology: v5e:2x2
jax: 0.10.0
libtpu: 0.0.40
codegen_flags: <defaults>
</compile_context>

<pallas_src>
import functools

import jax
import jax.numpy as jnp
from jax.experimental import pallas as pl
from jax.experimental.pallas import tpu as pltpu

_LANE = 128
_SUBLANE = 8


# ---------------------------------------------------------------------------
# Fused kernel: stacked LSTM (unrolled) + MLP head, one invocation.
# ---------------------------------------------------------------------------
def _fused_kernel(T, BP, H, n_layers, *refs):
    # refs = [x_ref, (wih, whh, b) * n_layers, w1, b1, w2, b2, w3, b3, out_ref]
    x_ref = refs[0]
    lstm_refs = refs[1:1 + 3 * n_layers]
    w1_ref, b1_ref, w2_ref, b2_ref, w3_ref, b3_ref = refs[1 + 3 * n_layers:-1]
    out_ref = refs[-1]

    def run_layer(xf, wih, whh, b):
        # Hoisted input projection + bias for the whole sequence: one matmul.
        proj = jnp.dot(xf, wih,
                       preferred_element_type=jnp.float32) + b    # (T*BP, 4H)
        h = jnp.zeros((BP, H), jnp.float32)
        c = jnp.zeros((BP, H), jnp.float32)
        hs = []
        for t in range(T):  # static unroll; T is tiny (8)
            gates = proj[t * BP:(t + 1) * BP, :] + jnp.dot(
                h, whh, preferred_element_type=jnp.float32)       # (BP, 4H)
            i_g = jax.nn.sigmoid(gates[:, 0:H])
            f_g = jax.nn.sigmoid(gates[:, H:2 * H])
            g_g = jnp.tanh(gates[:, 2 * H:3 * H])
            o_g = jax.nn.sigmoid(gates[:, 3 * H:4 * H])
            c = f_g * c + i_g * g_g
            h = o_g * jnp.tanh(c)
            hs.append(h)
        return jnp.concatenate(hs, axis=0)                        # (T*BP, H)

    xf = x_ref[...]                                               # (T*BP, Kin)
    for layer in range(n_layers):
        wih = lstm_refs[3 * layer][...]
        whh = lstm_refs[3 * layer + 1][...]
        b = lstm_refs[3 * layer + 2][...]
        xf = run_layer(xf, wih, whh, b)

    # MLP head on flattened LSTM output; all dims lane-padded in the wrapper.
    h1 = jnp.maximum(
        jnp.dot(xf, w1_ref[...], preferred_element_type=jnp.float32)
        + b1_ref[...], 0.0)
    h2 = jnp.maximum(
        jnp.dot(h1, w2_ref[...], preferred_element_type=jnp.float32)
        + b2_ref[...], 0.0)
    y = jax.nn.sigmoid(
        jnp.dot(h2, w3_ref[...], preferred_element_type=jnp.float32)
        + b3_ref[...])
    out_ref[...] = y                                              # single store


def _pad_cols(a, n):
    return jnp.pad(a, ((0, 0), (0, n - a.shape[1])))


def _pad_rows(a, n):
    return jnp.pad(a, ((0, n - a.shape[0]), (0, 0)))


# ---------------------------------------------------------------------------
# Full forward pass: padding / unpadding glue in plain JAX, compute in Pallas.
# ---------------------------------------------------------------------------
def lstm_bc_forward(x, params, batch_size):
    T, B, K = x.shape
    H = params["lstm"][0][1].shape[0]
    n_layers = len(params["lstm"])
    O = params["w3"].shape[1]

    # Pad batch to a full sublane tile (8 rows). Padded rows never mix with
    # real rows (all per-row math), so they are just sliced off afterwards.
    BP = max(_SUBLANE, ((B + _SUBLANE - 1) // _SUBLANE) * _SUBLANE)
    x_p = jnp.pad(x, ((0, 0), (0, BP - B), (0, 0)))
    x_flat = x_p.reshape(T * BP, K)                 # time-major flatten

    # Zero-pad MLP weights to lane width so every matmul output / the final
    # store is 128-lane dense.  relu(0)=0 keeps padded columns inert.
    D = _LANE
    w1p = _pad_cols(params["w1"], D)                # (H, 128)
    b1p = _pad_cols(params["b1"], D)                # (1, 128)
    w2p = _pad_cols(_pad_rows(params["w2"], D), D)  # (128, 128)
    b2p = _pad_cols(params["b2"], D)                # (1, 128)
    w3p = _pad_cols(_pad_rows(params["w3"], D), D)  # (128, 128)
    b3p = _pad_cols(params["b3"], D)                # (1, 128)

    inputs = [x_flat]
    in_specs = [pl.BlockSpec((T * BP, K), lambda i: (0, 0))]
    for (wih, whh, b) in params["lstm"]:
        inputs += [wih, whh, b]
        in_specs += [pl.BlockSpec(wih.shape, lambda i: (0, 0)),
                     pl.BlockSpec(whh.shape, lambda i: (0, 0)),
                     pl.BlockSpec(b.shape, lambda i: (0, 0))]
    for a in (w1p, b1p, w2p, b2p, w3p, b3p):
        inputs.append(a)
        in_specs.append(pl.BlockSpec(a.shape, lambda i: (0, 0)))

    kernel = functools.partial(_fused_kernel, T, BP, H, n_layers)
    out_p = pl.pallas_call(
        kernel,
        out_shape=jax.ShapeDtypeStruct((T * BP, D), jnp.float32),
        grid_spec=pltpu.PrefetchScalarGridSpec(
            num_scalar_prefetch=0,
            grid=(1,),
            in_specs=in_specs,
            out_specs=pl.BlockSpec((T * BP, D), lambda i: (0, 0)),
        ),
        compiler_params=pltpu.CompilerParams(
            dimension_semantics=("arbitrary",)),
    )(*inputs)

    # Strip batch padding and lane padding, then apply the module's
    # view(batch_size, -1)[:, -1] semantics.
    out = out_p.reshape(T, BP, D)[:, :B, :O].reshape(T * B, O)
    out = out.reshape(batch_size, -1)
    return out[:, -1]


# ---------------------------------------------------------------------------
# Pure-JAX reference (for correctness check).
# ---------------------------------------------------------------------------
def reference_forward(x, params, batch_size):
    layer_in = x
    for (w_ih_t, w_hh_t, bias) in params["lstm"]:
        T, B, _ = layer_in.shape
        H = w_hh_t.shape[0]
        h = jnp.zeros((B, H), jnp.float32)
        c = jnp.zeros((B, H), jnp.float32)
        outs = []
        for t in range(T):
            gates = layer_in[t] @ w_ih_t + h @ w_hh_t + bias
            i_g = jax.nn.sigmoid(gates[:, 0:H])
            f_g = jax.nn.sigmoid(gates[:, H:2 * H])
            g_g = jnp.tanh(gates[:, 2 * H:3 * H])
            o_g = jax.nn.sigmoid(gates[:, 3 * H:4 * H])
            c = f_g * c + i_g * g_g
            h = o_g * jnp.tanh(c)
            outs.append(h)
        layer_in = jnp.stack(outs, axis=0)
    T, B, H = layer_in.shape
    flat = layer_in.reshape(T * B, H)
    h1 = jnp.maximum(flat @ params["w1"] + params["b1"], 0.0)
    h2 = jnp.maximum(h1 @ params["w2"] + params["b2"], 0.0)
    out = jax.nn.sigmoid(h2 @ params["w3"] + params["b3"])
    return out.reshape(batch_size, -1)[:, -1]


# ---------------------------------------------------------------------------
# Deterministic parameter init (PyTorch-like uniform(-1/sqrt(H), 1/sqrt(H))).
# ---------------------------------------------------------------------------
def init_params(key, n_layers, input_dim, hidden_dim, output_size):
    bound = 1.0 / (hidden_dim ** 0.5)
    params = {"lstm": []}
    for layer in range(n_layers):
        k_in = input_dim if layer == 0 else hidden_dim
        key, k1, k2, k3, k4 = jax.random.split(key, 5)
        w_ih_t = jax.random.uniform(k1, (k_in, 4 * hidden_dim),
                                    jnp.float32, -bound, bound)
        w_hh_t = jax.random.uniform(k2, (hidden_dim, 4 * hidden_dim),
                                    jnp.float32, -bound, bound)
        b_ih = jax.random.uniform(k3, (1, 4 * hidden_dim),
                                  jnp.float32, -bound, bound)
        b_hh = jax.random.uniform(k4, (1, 4 * hidden_dim),
                                  jnp.float32, -bound, bound)
        params["lstm"].append((w_ih_t, w_hh_t, b_ih + b_hh))

    def linear(key, fan_in, fan_out):
        b = 1.0 / (fan_in ** 0.5)
        k1, k2 = jax.random.split(key)
        w = jax.random.uniform(k1, (fan_in, fan_out), jnp.float32, -b, b)
        bias = jax.random.uniform(k2, (1, fan_out), jnp.float32, -b, b)
        return w, bias

    key, k1, k2, k3 = jax.random.split(key, 4)
    params["w1"], params["b1"] = linear(k1, hidden_dim, 8)
    params["w2"], params["b2"] = linear(k2, 8, 8)
    params["w3"], params["b3"] = linear(k3, 8, output_size)
    return params


if __name__ == "__main__":
    n_layers = 2
    input_dim = 4        # K
    sequence_size = 8    # n (T)
    hidden_dim = 32
    batch_size = 2       # m (B)
    output_size = 1
    # TODO(synk): dropout layer and Adam optimizer from __init__ are unused in
    # forward(), so they are intentionally not implemented.

    key = jax.random.PRNGKey(0)
    key, pk, xk = jax.random.split(key, 3)
    params = init_params(pk, n_layers, input_dim, hidden_dim, output_size)
    x = jax.random.normal(xk, (sequence_size, batch_size, input_dim),
                          jnp.float32)

    out = lstm_bc_forward(x, params, batch_size)
    out = jax.block_until_ready(out)

    ref = jax.block_until_ready(reference_forward(x, params, batch_size))
    assert out.shape == (batch_size,), out.shape
    assert jnp.allclose(out, ref, rtol=2e-3, atol=2e-3), (out, ref)

    print("KERNEL_OK")
</pallas_src>

<mosaic_0001>
module attributes {stable_mosaic.version = 11 : i64} {
  func.func @_fused_kernel(%arg0: i32, %arg1: memref<64x4xf32, #tpu.memory_space<vmem>>, %arg2: memref<4x128xf32, #tpu.memory_space<vmem>>, %arg3: memref<32x128xf32, #tpu.memory_space<vmem>>, %arg4: memref<1x128xf32, #tpu.memory_space<vmem>>, %arg5: memref<32x128xf32, #tpu.memory_space<vmem>>, %arg6: memref<32x128xf32, #tpu.memory_space<vmem>>, %arg7: memref<1x128xf32, #tpu.memory_space<vmem>>, %arg8: memref<32x128xf32, #tpu.memory_space<vmem>>, %arg9: memref<1x128xf32, #tpu.memory_space<vmem>>, %arg10: memref<128x128xf32, #tpu.memory_space<vmem>>, %arg11: memref<1x128xf32, #tpu.memory_space<vmem>>, %arg12: memref<128x128xf32, #tpu.memory_space<vmem>>, %arg13: memref<1x128xf32, #tpu.memory_space<vmem>>, %arg14: memref<64x128xf32, #tpu.memory_space<vmem>>) attributes {dimension_semantics = [#tpu.dimension_semantics<arbitrary>], iteration_bounds = array<i64: 1>, scalar_prefetch = 0 : i64, scratch_operands = 0 : i64, tpu.core_type = #tpu.core_type<tc>, window_params = [{pipeline_mode = #tpu.pipeline_mode<synchronous>, transform_indices = @transform_0, window_bounds = array<i64: 64, 4>}, {pipeline_mode = #tpu.pipeline_mode<synchronous>, transform_indices = @transform_1, window_bounds = array<i64: 4, 128>}, {pipeline_mode = #tpu.pipeline_mode<synchronous>, transform_indices = @transform_2, window_bounds = array<i64: 32, 128>}, {pipeline_mode = #tpu.pipeline_mode<synchronous>, transform_indices = @transform_3, window_bounds = array<i64: 1, 128>}, {pipeline_mode = #tpu.pipeline_mode<synchronous>, transform_indices = @transform_4, window_bounds = array<i64: 32, 128>}, {pipeline_mode = #tpu.pipeline_mode<synchronous>, transform_indices = @transform_5, window_bounds = array<i64: 32, 128>}, {pipeline_mode = #tpu.pipeline_mode<synchronous>, transform_indices = @transform_6, window_bounds = array<i64: 1, 128>}, {pipeline_mode = #tpu.pipeline_mode<synchronous>, transform_indices = @transform_7, window_bounds = array<i64: 32, 128>}, {pipeline_mode = #tpu.pipeline_mode<synchronous>, transform_indices = @transform_8, window_bounds = array<i64: 1, 128>}, {pipeline_mode = #tpu.pipeline_mode<synchronous>, transform_indices = @transform_9, window_bounds = array<i64: 128, 128>}, {pipeline_mode = #tpu.pipeline_mode<synchronous>, transform_indices = @transform_10, window_bounds = array<i64: 1, 128>}, {pipeline_mode = #tpu.pipeline_mode<synchronous>, transform_indices = @transform_11, window_bounds = array<i64: 128, 128>}, {pipeline_mode = #tpu.pipeline_mode<synchronous>, transform_indices = @transform_12, window_bounds = array<i64: 1, 128>}, {pipeline_mode = #tpu.pipeline_mode<synchronous>, transform_indices = @transform_13, window_bounds = array<i64: 64, 128>}]} {
    %c0 = arith.constant 0 : index
    %c0_0 = arith.constant 0 : index
    %0 = vector.load %arg1[%c0, %c0_0] : memref<64x4xf32, #tpu.memory_space<vmem>>, vector<64x4xf32>
    %c0_1 = arith.constant 0 : index
    %c0_2 = arith.constant 0 : index
    %1 = vector.load %arg2[%c0_1, %c0_2] : memref<4x128xf32, #tpu.memory_space<vmem>>, vector<4x128xf32>
    %c0_3 = arith.constant 0 : index
    %c0_4 = arith.constant 0 : index
    %2 = vector.load %arg3[%c0_3, %c0_4] : memref<32x128xf32, #tpu.memory_space<vmem>>, vector<32x128xf32>
    %c0_5 = arith.constant 0 : index
    %c0_6 = arith.constant 0 : index
    %3 = vector.load %arg4[%c0_5, %c0_6] : memref<1x128xf32, #tpu.memory_space<vmem>>, vector<1x128xf32>
    %cst = arith.constant dense<0.000000e+00> : vector<64x128xf32>
    %4 = tpu.matmul %0, %1, %cst {dimension_numbers = #tpu.dot_dimension_numbers<[1], [0], [0], [1], [0, 0, 1, 1], [], []>} : vector<64x4xf32>, vector<4x128xf32>, vector<64x128xf32> -> vector<64x128xf32>
    %5 = vector.broadcast %3 : vector<1x128xf32> to vector<64x128xf32>
    %6 = arith.addf %4, %5 : vector<64x128xf32>
    %cst_7 = arith.constant 0.000000e+00 : f32
    %7 = vector.broadcast %cst_7 : f32 to vector<8x32xf32>
    %cst_8 = arith.constant 0.000000e+00 : f32
    %8 = vector.broadcast %cst_8 : f32 to vector<8x32xf32>
    %9 = vector.extract_strided_slice %6 {offsets = [0, 0], sizes = [8, 128], strides = [1, 1]} : vector<64x128xf32> to vector<8x128xf32>
    %cst_9 = arith.constant dense<0.000000e+00> : vector<8x128xf32>
    %10 = tpu.matmul %7, %2, %cst_9 {dimension_numbers = #tpu.dot_dimension_numbers<[1], [0], [0], [1], [0, 0, 1, 1], [], []>} : vector<8x32xf32>, vector<32x128xf32>, vector<8x128xf32> -> vector<8x128xf32>
    %11 = arith.addf %9, %10 : vector<8x128xf32>
    %12 = vector.extract_strided_slice %11 {offsets = [0, 0], sizes = [8, 32], strides = [1, 1]} : vector<8x128xf32> to vector<8x32xf32>
    %13 = arith.negf %12 : vector<8x32xf32>
    %14 = math.exp %13 : vector<8x32xf32>
    %cst_10 = arith.constant 1.000000e+00 : f32
    %15 = vector.broadcast %cst_10 : f32 to vector<8x32xf32>
    %16 = arith.addf %15, %14 : vector<8x32xf32>
    %17 = arith.divf %15, %16 : vector<8x32xf32>
    %18 = vector.extract_strided_slice %11 {offsets = [0, 32], sizes = [8, 32], strides = [1, 1]} : vector<8x128xf32> to vector<8x32xf32>
    %19 = arith.negf %18 : vector<8x32xf32>
    %20 = math.exp %19 : vector<8x32xf32>
    %cst_11 = arith.constant 1.000000e+00 : f32
    %21 = vector.broadcast %cst_11 : f32 to vector<8x32xf32>
    %22 = arith.addf %21, %20 : vector<8x32xf32>
    %23 = arith.divf %21, %22 : vector<8x32xf32>
    %24 = vector.extract_strided_slice %11 {offsets = [0, 64], sizes = [8, 32], strides = [1, 1]} : vector<8x128xf32> to vector<8x32xf32>
    %25 = math.tanh %24 : vector<8x32xf32>
    %26 = vector.extract_strided_slice %11 {offsets = [0, 96], sizes = [8, 32], strides = [1, 1]} : vector<8x128xf32> to vector<8x32xf32>
    %27 = arith.negf %26 : vector<8x32xf32>
    %28 = math.exp %27 : vector<8x32xf32>
    %cst_12 = arith.constant 1.000000e+00 : f32
    %29 = vector.broadcast %cst_12 : f32 to vector<8x32xf32>
    %30 = arith.addf %29, %28 : vector<8x32xf32>
    %31 = arith.divf %29, %30 : vector<8x32xf32>
    %32 = arith.mulf %23, %8 : vector<8x32xf32>
    %33 = arith.mulf %17, %25 : vector<8x32xf32>
    %34 = arith.addf %32, %33 : vector<8x32xf32>
    %35 = math.tanh %34 : vector<8x32xf32>
    %36 = arith.mulf %31, %35 : vector<8x32xf32>
    %37 = vector.extract_strided_slice %6 {offsets = [8, 0], sizes = [8, 128], strides = [1, 1]} : vector<64x128xf32> to vector<8x128xf32>
    %cst_13 = arith.constant dense<0.000000e+00> : vector<8x128xf32>
    %38 = tpu.matmul %36, %2, %cst_13 {dimension_numbers = #tpu.dot_dimension_numbers<[1], [0], [0], [1], [0, 0, 1, 1], [], []>} : vector<8x32xf32>, vector<32x128xf32>, vector<8x128xf32> -> vector<8x128xf32>
    %39 = arith.addf %37, %38 : vector<8x128xf32>
    %40 = vector.extract_strided_slice %39 {offsets = [0, 0], sizes = [8, 32], strides = [1, 1]} : vector<8x128xf32> to vector<8x32xf32>
    %41 = arith.negf %40 : vector<8x32xf32>
    %42 = math.exp %41 : vector<8x32xf32>
    %cst_14 = arith.constant 1.000000e+00 : f32
    %43 = vector.broadcast %cst_14 : f32 to vector<8x32xf32>
    %44 = arith.addf %43, %42 : vector<8x32xf32>
    %45 = arith.divf %43, %44 : vector<8x32xf32>
    %46 = vector.extract_strided_slice %39 {offsets = [0, 32], sizes = [8, 32], strides = [1, 1]} : vector<8x128xf32> to vector<8x32xf32>
    %47 = arith.negf %46 : vector<8x32xf32>
    %48 = math.exp %47 : vector<8x32xf32>
    %cst_15 = arith.constant 1.000000e+00 : f32
    %49 = vector.broadcast %cst_15 : f32 to vector<8x32xf32>
    %50 = arith.addf %49, %48 : vector<8x32xf32>
    %51 = arith.divf %49, %50 : vector<8x32xf32>
    %52 = vector.extract_strided_slice %39 {offsets = [0, 64], sizes = [8, 32], strides = [1, 1]} : vector<8x128xf32> to vector<8x32xf32>
    %53 = math.tanh %52 : vector<8x32xf32>
    %54 = vector.extract_strided_slice %39 {offsets = [0, 96], sizes = [8, 32], strides = [1, 1]} : vector<8x128xf32> to vector<8x32xf32>
    %55 = arith.negf %54 : vector<8x32xf32>
    %56 = math.exp %55 : vector<8x32xf32>
    %cst_16 = arith.constant 1.000000e+00 : f32
    %57 = vector.broadcast %cst_16 : f32 to vector<8x32xf32>
    %58 = arith.addf %57, %56 : vector<8x32xf32>
    %59 = arith.divf %57, %58 : vector<8x32xf32>
    %60 = arith.mulf %51, %34 : vector<8x32xf32>
    %61 = arith.mulf %45, %53 : vector<8x32xf32>
    %62 = arith.addf %60, %61 : vector<8x32xf32>
    %63 = math.tanh %62 : vector<8x32xf32>
    %64 = arith.mulf %59, %63 : vector<8x32xf32>
    %65 = vector.extract_strided_slice %6 {offsets = [16, 0], sizes = [8, 128], strides = [1, 1]} : vector<64x128xf32> to vector<8x128xf32>
    %cst_17 = arith.constant dense<0.000000e+00> : vector<8x128xf32>
    %66 = tpu.matmul %64, %2, %cst_17 {dimension_numbers = #tpu.dot_dimension_numbers<[1], [0], [0], [1], [0, 0, 1, 1], [], []>} : vector<8x32xf32>, vector<32x128xf32>, vector<8x128xf32> -> vector<8x128xf32>
    %67 = arith.addf %65, %66 : vector<8x128xf32>
    %68 = vector.extract_strided_slice %67 {offsets = [0, 0], sizes = [8, 32], strides = [1, 1]} : vector<8x128xf32> to vector<8x32xf32>
    %69 = arith.negf %68 : vector<8x32xf32>
    %70 = math.exp %69 : vector<8x32xf32>
    %cst_18 = arith.constant 1.000000e+00 : f32
    %71 = vector.broadcast %cst_18 : f32 to vector<8x32xf32>
    %72 = arith.addf %71, %70 : vector<8x32xf32>
    %73 = arith.divf %71, %72 : vector<8x32xf32>
    %74 = vector.extract_strided_slice %67 {offsets = [0, 32], sizes = [8, 32], strides = [1, 1]} : vector<8x128xf32> to vector<8x32xf32>
    %75 = arith.negf %74 : vector<8x32xf32>
    %76 = math.exp %75 : vector<8x32xf32>
    %cst_19 = arith.constant 1.000000e+00 : f32
    %77 = vector.broadcast %cst_19 : f32 to vector<8x32xf32>
    %78 = arith.addf %77, %76 : vector<8x32xf32>
    %79 = arith.divf %77, %78 : vector<8x32xf32>
    %80 = vector.extract_strided_slice %67 {offsets = [0, 64], sizes = [8, 32], strides = [1, 1]} : vector<8x128xf32> to vector<8x32xf32>
    %81 = math.tanh %80 : vector<8x32xf32>
    %82 = vector.extract_strided_slice %67 {offsets = [0, 96], sizes = [8, 32], strides = [1, 1]} : vector<8x128xf32> to vector<8x32xf32>
    %83 = arith.negf %82 : vector<8x32xf32>
    %84 = math.exp %83 : vector<8x32xf32>
    %cst_20 = arith.constant 1.000000e+00 : f32
    %85 = vector.broadcast %cst_20 : f32 to vector<8x32xf32>
    %86 = arith.addf %85, %84 : vector<8x32xf32>
    %87 = arith.divf %85, %86 : vector<8x32xf32>
    %88 = arith.mulf %79, %62 : vector<8x32xf32>
    %89 = arith.mulf %73, %81 : vector<8x32xf32>
    %90 = arith.addf %88, %89 : vector<8x32xf32>
    %91 = math.tanh %90 : vector<8x32xf32>
    %92 = arith.mulf %87, %91 : vector<8x32xf32>
    %93 = vector.extract_strided_slice %6 {offsets = [24, 0], sizes = [8, 128], strides = [1, 1]} : vector<64x128xf32> to vector<8x128xf32>
    %cst_21 = arith.constant dense<0.000000e+00> : vector<8x128xf32>
    %94 = tpu.matmul %92, %2, %cst_21 {dimension_numbers = #tpu.dot_dimension_numbers<[1], [0], [0], [1], [0, 0, 1, 1], [], []>} : vector<8x32xf32>, vector<32x128xf32>, vector<8x128xf32> -> vector<8x128xf32>
    %95 = arith.addf %93, %94 : vector<8x128xf32>
    %96 = vector.extract_strided_slice %95 {offsets = [0, 0], sizes = [8, 32], strides = [1, 1]} : vector<8x128xf32> to vector<8x32xf32>
    %97 = arith.negf %96 : vector<8x32xf32>
    %98 = math.exp %97 : vector<8x32xf32>
    %cst_22 = arith.constant 1.000000e+00 : f32
    %99 = vector.broadcast %cst_22 : f32 to vector<8x32xf32>
    %100 = arith.addf %99, %98 : vector<8x32xf32>
    %101 = arith.divf %99, %100 : vector<8x32xf32>
    %102 = vector.extract_strided_slice %95 {offsets = [0, 32], sizes = [8, 32], strides = [1, 1]} : vector<8x128xf32> to vector<8x32xf32>
    %103 = arith.negf %102 : vector<8x32xf32>
    %104 = math.exp %103 : vector<8x32xf32>
    %cst_23 = arith.constant 1.000000e+00 : f32
    %105 = vector.broadcast %cst_23 : f32 to vector<8x32xf32>
    %106 = arith.addf %105, %104 : vector<8x32xf32>
    %107 = arith.divf %105, %106 : vector<8x32xf32>
    %108 = vector.extract_strided_slice %95 {offsets = [0, 64], sizes = [8, 32], strides = [1, 1]} : vector<8x128xf32> to vector<8x32xf32>
    %109 = math.tanh %108 : vector<8x32xf32>
    %110 = vector.extract_strided_slice %95 {offsets = [0, 96], sizes = [8, 32], strides = [1, 1]} : vector<8x128xf32> to vector<8x32xf32>
    %111 = arith.negf %110 : vector<8x32xf32>
    %112 = math.exp %111 : vector<8x32xf32>
    %cst_24 = arith.constant 1.000000e+00 : f32
    %113 = vector.broadcast %cst_24 : f32 to vector<8x32xf32>
    %114 = arith.addf %113, %112 : vector<8x32xf32>
    %115 = arith.divf %113, %114 : vector<8x32xf32>
    %116 = arith.mulf %107, %90 : vector<8x32xf32>
    %117 = arith.mulf %101, %109 : vector<8x32xf32>
    %118 = arith.addf %116, %117 : vector<8x32xf32>
    %119 = math.tanh %118 : vector<8x32xf32>
    %120 = arith.mulf %115, %119 : vector<8x32xf32>
    %121 = vector.extract_strided_slice %6 {offsets = [32, 0], sizes = [8, 128], strides = [1, 1]} : vector<64x128xf32> to vector<8x128xf32>
    %cst_25 = arith.constant dense<0.000000e+00> : vector<8x128xf32>
    %122 = tpu.matmul %120, %2, %cst_25 {dimension_numbers = #tpu.dot_dimension_numbers<[1], [0], [0], [1], [0, 0, 1, 1], [], []>} : vector<8x32xf32>, vector<32x128xf32>, vector<8x128xf32> -> vector<8x128xf32>
    %123 = arith.addf %121, %122 : vector<8x128xf32>
    %124 = vector.extract_strided_slice %123 {offsets = [0, 0], sizes = [8, 32], strides = [1, 1]} : vector<8x128xf32> to vector<8x32xf32>
    %125 = arith.negf %124 : vector<8x32xf32>
    %126 = math.exp %125 : vector<8x32xf32>
    %cst_26 = arith.constant 1.000000e+00 : f32
    %127 = vector.broadcast %cst_26 : f32 to vector<8x32xf32>
    %128 = arith.addf %127, %126 : vector<8x32xf32>
    %129 = arith.divf %127, %128 : vector<8x32xf32>
    %130 = vector.extract_strided_slice %123 {offsets = [0, 32], sizes = [8, 32], strides = [1, 1]} : vector<8x128xf32> to vector<8x32xf32>
    %131 = arith.negf %130 : vector<8x32xf32>
    %132 = math.exp %131 : vector<8x32xf32>
    %cst_27 = arith.constant 1.000000e+00 : f32
    %133 = vector.broadcast %cst_27 : f32 to vector<8x32xf32>
    %134 = arith.addf %133, %132 : vector<8x32xf32>
    %135 = arith.divf %133, %134 : vector<8x32xf32>
    %136 = vector.extract_strided_slice %123 {offsets = [0, 64], sizes = [8, 32], strides = [1, 1]} : vector<8x128xf32> to vector<8x32xf32>
    %137 = math.tanh %136 : vector<8x32xf32>
    %138 = vector.extract_strided_slice %123 {offsets = [0, 96], sizes = [8, 32], strides = [1, 1]} : vector<8x128xf32> to vector<8x32xf32>
    %139 = arith.negf %138 : vector<8x32xf32>
    %140 = math.exp %139 : vector<8x32xf32>
    %cst_28 = arith.constant 1.000000e+00 : f32
    %141 = vector.broadcast %cst_28 : f32 to vector<8x32xf32>
    %142 = arith.addf %141, %140 : vector<8x32xf32>
    %143 = arith.divf %141, %142 : vector<8x32xf32>
    %144 = arith.mulf %135, %118 : vector<8x32xf32>
    %145 = arith.mulf %129, %137 : vector<8x32xf32>
    %146 = arith.addf %144, %145 : vector<8x32xf32>
    %147 = math.tanh %146 : vector<8x32xf32>
    %148 = arith.mulf %143, %147 : vector<8x32xf32>
    %149 = vector.extract_strided_slice %6 {offsets = [40, 0], sizes = [8, 128], strides = [1, 1]} : vector<64x128xf32> to vector<8x128xf32>
    %cst_29 = arith.constant dense<0.000000e+00> : vector<8x128xf32>
    %150 = tpu.matmul %148, %2, %cst_29 {dimension_numbers = #tpu.dot_dimension_numbers<[1], [0], [0], [1], [0, 0, 1, 1], [], []>} : vector<8x32xf32>, vector<32x128xf32>, vector<8x128xf32> -> vector<8x128xf32>
    %151 = arith.addf %149, %150 : vector<8x128xf32>
    %152 = vector.extract_strided_slice %151 {offsets = [0, 0], sizes = [8, 32], strides = [1, 1]} : vector<8x128xf32> to vector<8x32xf32>
    %153 = arith.negf %152 : vector<8x32xf32>
    %154 = math.exp %153 : vector<8x32xf32>
    %cst_30 = arith.constant 1.000000e+00 : f32
    %155 = vector.broadcast %cst_30 : f32 to vector<8x32xf32>
    %156 = arith.addf %155, %154 : vector<8x32xf32>
    %157 = arith.divf %155, %156 : vector<8x32xf32>
    %158 = vector.extract_strided_slice %151 {offsets = [0, 32], sizes = [8, 32], strides = [1, 1]} : vector<8x128xf32> to vector<8x32xf32>
    %159 = arith.negf %158 : vector<8x32xf32>
    %160 = math.exp %159 : vector<8x32xf32>
    %cst_31 = arith.constant 1.000000e+00 : f32
    %161 = vector.broadcast %cst_31 : f32 to vector<8x32xf32>
    %162 = arith.addf %161, %160 : vector<8x32xf32>
    %163 = arith.divf %161, %162 : vector<8x32xf32>
    %164 = vector.extract_strided_slice %151 {offsets = [0, 64], sizes = [8, 32], strides = [1, 1]} : vector<8x128xf32> to vector<8x32xf32>
    %165 = math.tanh %164 : vector<8x32xf32>
    %166 = vector.extract_strided_slice %151 {offsets = [0, 96], sizes = [8, 32], strides = [1, 1]} : vector<8x128xf32> to vector<8x32xf32>
    %167 = arith.negf %166 : vector<8x32xf32>
    %168 = math.exp %167 : vector<8x32xf32>
    %cst_32 = arith.constant 1.000000e+00 : f32
    %169 = vector.broadcast %cst_32 : f32 to vector<8x32xf32>
    %170 = arith.addf %169, %168 : vector<8x32xf32>
    %171 = arith.divf %169, %170 : vector<8x32xf32>
    %172 = arith.mulf %163, %146 : vector<8x32xf32>
    %173 = arith.mulf %157, %165 : vector<8x32xf32>
    %174 = arith.addf %172, %173 : vector<8x32xf32>
    %175 = math.tanh %174 : vector<8x32xf32>
    %176 = arith.mulf %171, %175 : vector<8x32xf32>
    %177 = vector.extract_strided_slice %6 {offsets = [48, 0], sizes = [8, 128], strides = [1, 1]} : vector<64x128xf32> to vector<8x128xf32>
    %cst_33 = arith.constant dense<0.000000e+00> : vector<8x128xf32>
    %178 = tpu.matmul %176, %2, %cst_33 {dimension_numbers = #tpu.dot_dimension_numbers<[1], [0], [0], [1], [0, 0, 1, 1], [], []>} : vector<8x32xf32>, vector<32x128xf32>, vector<8x128xf32> -> vector<8x128xf32>
    %179 = arith.addf %177, %178 : vector<8x128xf32>
    %180 = vector.extract_strided_slice %179 {offsets = [0, 0], sizes = [8, 32], strides = [1, 1]} : vector<8x128xf32> to vector<8x32xf32>
    %181 = arith.negf %180 : vector<8x32xf32>
    %182 = math.exp %181 : vector<8x32xf32>
    %cst_34 = arith.constant 1.000000e+00 : f32
    %183 = vector.broadcast %cst_34 : f32 to vector<8x32xf32>
    %184 = arith.addf %183, %182 : vector<8x32xf32>
    %185 = arith.divf %183, %184 : vector<8x32xf32>
    %186 = vector.extract_strided_slice %179 {offsets = [0, 32], sizes = [8, 32], strides = [1, 1]} : vector<8x128xf32> to vector<8x32xf32>
    %187 = arith.negf %186 : vector<8x32xf32>
    %188 = math.exp %187 : vector<8x32xf32>
    %cst_35 = arith.constant 1.000000e+00 : f32
    %189 = vector.broadcast %cst_35 : f32 to vector<8x32xf32>
    %190 = arith.addf %189, %188 : vector<8x32xf32>
    %191 = arith.divf %189, %190 : vector<8x32xf32>
    %192 = vector.extract_strided_slice %179 {offsets = [0, 64], sizes = [8, 32], strides = [1, 1]} : vector<8x128xf32> to vector<8x32xf32>
    %193 = math.tanh %192 : vector<8x32xf32>
    %194 = vector.extract_strided_slice %179 {offsets = [0, 96], sizes = [8, 32], strides = [1, 1]} : vector<8x128xf32> to vector<8x32xf32>
    %195 = arith.negf %194 : vector<8x32xf32>
    %196 = math.exp %195 : vector<8x32xf32>
    %cst_36 = arith.constant 1.000000e+00 : f32
    %197 = vector.broadcast %cst_36 : f32 to vector<8x32xf32>
    %198 = arith.addf %197, %196 : vector<8x32xf32>
    %199 = arith.divf %197, %198 : vector<8x32xf32>
    %200 = arith.mulf %191, %174 : vector<8x32xf32>
    %201 = arith.mulf %185, %193 : vector<8x32xf32>
    %202 = arith.addf %200, %201 : vector<8x32xf32>
    %203 = math.tanh %202 : vector<8x32xf32>
    %204 = arith.mulf %199, %203 : vector<8x32xf32>
    %205 = vector.extract_strided_slice %6 {offsets = [56, 0], sizes = [8, 128], strides = [1, 1]} : vector<64x128xf32> to vector<8x128xf32>
    %cst_37 = arith.constant dense<0.000000e+00> : vector<8x128xf32>
    %206 = tpu.matmul %204, %2, %cst_37 {dimension_numbers = #tpu.dot_dimension_numbers<[1], [0], [0], [1], [0, 0, 1, 1], [], []>} : vector<8x32xf32>, vector<32x128xf32>, vector<8x128xf32> -> vector<8x128xf32>
    %207 = arith.addf %205, %206 : vector<8x128xf32>
    %208 = vector.extract_strided_slice %207 {offsets = [0, 0], sizes = [8, 32], strides = [1, 1]} : vector<8x128xf32> to vector<8x32xf32>
    %209 = arith.negf %208 : vector<8x32xf32>
    %210 = math.exp %209 : vector<8x32xf32>
    %cst_38 = arith.constant 1.000000e+00 : f32
    %211 = vector.broadcast %cst_38 : f32 to vector<8x32xf32>
    %212 = arith.addf %211, %210 : vector<8x32xf32>
    %213 = arith.divf %211, %212 : vector<8x32xf32>
    %214 = vector.extract_strided_slice %207 {offsets = [0, 32], sizes = [8, 32], strides = [1, 1]} : vector<8x128xf32> to vector<8x32xf32>
    %215 = arith.negf %214 : vector<8x32xf32>
    %216 = math.exp %215 : vector<8x32xf32>
    %cst_39 = arith.constant 1.000000e+00 : f32
    %217 = vector.broadcast %cst_39 : f32 to vector<8x32xf32>
    %218 = arith.addf %217, %216 : vector<8x32xf32>
    %219 = arith.divf %217, %218 : vector<8x32xf32>
    %220 = vector.extract_strided_slice %207 {offsets = [0, 64], sizes = [8, 32], strides = [1, 1]} : vector<8x128xf32> to vector<8x32xf32>
    %221 = math.tanh %220 : vector<8x32xf32>
    %222 = vector.extract_strided_slice %207 {offsets = [0, 96], sizes = [8, 32], strides = [1, 1]} : vector<8x128xf32> to vector<8x32xf32>
    %223 = arith.negf %222 : vector<8x32xf32>
    %224 = math.exp %223 : vector<8x32xf32>
    %cst_40 = arith.constant 1.000000e+00 : f32
    %225 = vector.broadcast %cst_40 : f32 to vector<8x32xf32>
    %226 = arith.addf %225, %224 : vector<8x32xf32>
    %227 = arith.divf %225, %226 : vector<8x32xf32>
    %228 = arith.mulf %219, %202 : vector<8x32xf32>
    %229 = arith.mulf %213, %221 : vector<8x32xf32>
    %230 = arith.addf %228, %229 : vector<8x32xf32>
    %231 = math.tanh %230 : vector<8x32xf32>
    %232 = arith.mulf %227, %231 : vector<8x32xf32>
    %233 = tpu.concatenate %36, %64, %92, %120, %148, %176, %204, %232 in 0 : vector<8x32xf32>, vector<8x32xf32>, vector<8x32xf32>, vector<8x32xf32>, vector<8x32xf32>, vector<8x32xf32>, vector<8x32xf32>, vector<8x32xf32> -> vector<64x32xf32>
    %c0_41 = arith.constant 0 : index
    %c0_42 = arith.constant 0 : index
    %234 = vector.load %arg5[%c0_41, %c0_42] : memref<32x128xf32, #tpu.memory_space<vmem>>, vector<32x128xf32>
    %c0_43 = arith.constant 0 : index
    %c0_44 = arith.constant 0 : index
    %235 = vector.load %arg6[%c0_43, %c0_44] : memref<32x128xf32, #tpu.memory_space<vmem>>, vector<32x128xf32>
    %c0_45 = arith.constant 0 : index
    %c0_46 = arith.constant 0 : index
    %236 = vector.load %arg7[%c0_45, %c0_46] : memref<1x128xf32, #tpu.memory_space<vmem>>, vector<1x128xf32>
    %cst_47 = arith.constant dense<0.000000e+00> : vector<64x128xf32>
    %237 = tpu.matmul %233, %234, %cst_47 {dimension_numbers = #tpu.dot_dimension_numbers<[1], [0], [0], [1], [0, 0, 1, 1], [], []>} : vector<64x32xf32>, vector<32x128xf32>, vector<64x128xf32> -> vector<64x128xf32>
    %238 = vector.broadcast %236 : vector<1x128xf32> to vector<64x128xf32>
    %239 = arith.addf %237, %238 : vector<64x128xf32>
    %cst_48 = arith.constant 0.000000e+00 : f32
    %240 = vector.broadcast %cst_48 : f32 to vector<8x32xf32>
    %cst_49 = arith.constant 0.000000e+00 : f32
    %241 = vector.broadcast %cst_49 : f32 to vector<8x32xf32>
    %242 = vector.extract_strided_slice %239 {offsets = [0, 0], sizes = [8, 128], strides = [1, 1]} : vector<64x128xf32> to vector<8x128xf32>
    %cst_50 = arith.constant dense<0.000000e+00> : vector<8x128xf32>
    %243 = tpu.matmul %240, %235, %cst_50 {dimension_numbers = #tpu.dot_dimension_numbers<[1], [0], [0], [1], [0, 0, 1, 1], [], []>} : vector<8x32xf32>, vector<32x128xf32>, vector<8x128xf32> -> vector<8x128xf32>
    %244 = arith.addf %242, %243 : vector<8x128xf32>
    %245 = vector.extract_strided_slice %244 {offsets = [0, 0], sizes = [8, 32], strides = [1, 1]} : vector<8x128xf32> to vector<8x32xf32>
    %246 = arith.negf %245 : vector<8x32xf32>
    %247 = math.exp %246 : vector<8x32xf32>
    %cst_51 = arith.constant 1.000000e+00 : f32
    %248 = vector.broadcast %cst_51 : f32 to vector<8x32xf32>
    %249 = arith.addf %248, %247 : vector<8x32xf32>
    %250 = arith.divf %248, %249 : vector<8x32xf32>
    %251 = vector.extract_strided_slice %244 {offsets = [0, 32], sizes = [8, 32], strides = [1, 1]} : vector<8x128xf32> to vector<8x32xf32>
    %252 = arith.negf %251 : vector<8x32xf32>
    %253 = math.exp %252 : vector<8x32xf32>
    %cst_52 = arith.constant 1.000000e+00 : f32
    %254 = vector.broadcast %cst_52 : f32 to vector<8x32xf32>
    %255 = arith.addf %254, %253 : vector<8x32xf32>
    %256 = arith.divf %254, %255 : vector<8x32xf32>
    %257 = vector.extract_strided_slice %244 {offsets = [0, 64], sizes = [8, 32], strides = [1, 1]} : vector<8x128xf32> to vector<8x32xf32>
    %258 = math.tanh %257 : vector<8x32xf32>
    %259 = vector.extract_strided_slice %244 {offsets = [0, 96], sizes = [8, 32], strides = [1, 1]} : vector<8x128xf32> to vector<8x32xf32>
    %260 = arith.negf %259 : vector<8x32xf32>
    %261 = math.exp %260 : vector<8x32xf32>
    %cst_53 = arith.constant 1.000000e+00 : f32
    %262 = vector.broadcast %cst_53 : f32 to vector<8x32xf32>
    %263 = arith.addf %262, %261 : vector<8x32xf32>
    %264 = arith.divf %262, %263 : vector<8x32xf32>
    %265 = arith.mulf %256, %241 : vector<8x32xf32>
    %266 = arith.mulf %250, %258 : vector<8x32xf32>
    %267 = arith.addf %265, %266 : vector<8x32xf32>
    %268 = math.tanh %267 : vector<8x32xf32>
    %269 = arith.mulf %264, %268 : vector<8x32xf32>
    %270 = vector.extract_strided_slice %239 {offsets = [8, 0], sizes = [8, 128], strides = [1, 1]} : vector<64x128xf32> to vector<8x128xf32>
    %cst_54 = arith.constant dense<0.000000e+00> : vector<8x128xf32>
    %271 = tpu.matmul %269, %235, %cst_54 {dimension_numbers = #tpu.dot_dimension_numbers<[1], [0], [0], [1], [0, 0, 1, 1], [], []>} : vector<8x32xf32>, vector<32x128xf32>, vector<8x128xf32> -> vector<8x128xf32>
    %272 = arith.addf %270, %271 : vector<8x128xf32>
    %273 = vector.extract_strided_slice %272 {offsets = [0, 0], sizes = [8, 32], strides = [1, 1]} : vector<8x128xf32> to vector<8x32xf32>
    %274 = arith.negf %273 : vector<8x32xf32>
    %275 = math.exp %274 : vector<8x32xf32>
    %cst_55 = arith.constant 1.000000e+00 : f32
    %276 = vector.broadcast %cst_55 : f32 to vector<8x32xf32>
    %277 = arith.addf %276, %275 : vector<8x32xf32>
    %278 = arith.divf %276, %277 : vector<8x32xf32>
    %279 = vector.extract_strided_slice %272 {offsets = [0, 32], sizes = [8, 32], strides = [1, 1]} : vector<8x128xf32> to vector<8x32xf32>
    %280 = arith.negf %279 : vector<8x32xf32>
    %281 = math.exp %280 : vector<8x32xf32>
    %cst_56 = arith.constant 1.000000e+00 : f32
    %282 = vector.broadcast %cst_56 : f32 to vector<8x32xf32>
    %283 = arith.addf %282, %281 : vector<8x32xf32>
    %284 = arith.divf %282, %283 : vector<8x32xf32>
    %285 = vector.extract_strided_slice %272 {offsets = [0, 64], sizes = [8, 32], strides = [1, 1]} : vector<8x128xf32> to vector<8x32xf32>
    %286 = math.tanh %285 : vector<8x32xf32>
    %287 = vector.extract_strided_slice %272 {offsets = [0, 96], sizes = [8, 32], strides = [1, 1]} : vector<8x128xf32> to vector<8x32xf32>
    %288 = arith.negf %287 : vector<8x32xf32>
    %289 = math.exp %288 : vector<8x32xf32>
    %cst_57 = arith.constant 1.000000e+00 : f32
    %290 = vector.broadcast %cst_57 : f32 to vector<8x32xf32>
    %291 = arith.addf %290, %289 : vector<8x32xf32>
    %292 = arith.divf %290, %291 : vector<8x32xf32>
    %293 = arith.mulf %284, %267 : vector<8x32xf32>
    %294 = arith.mulf %278, %286 : vector<8x32xf32>
    %295 = arith.addf %293, %294 : vector<8x32xf32>
    %296 = math.tanh %295 : vector<8x32xf32>
    %297 = arith.mulf %292, %296 : vector<8x32xf32>
    %298 = vector.extract_strided_slice %239 {offsets = [16, 0], sizes = [8, 128], strides = [1, 1]} : vector<64x128xf32> to vector<8x128xf32>
    %cst_58 = arith.constant dense<0.000000e+00> : vector<8x128xf32>
    %299 = tpu.matmul %297, %235, %cst_58 {dimension_numbers = #tpu.dot_dimension_numbers<[1], [0], [0], [1], [0, 0, 1, 1], [], []>} : vector<8x32xf32>, vector<32x128xf32>, vector<8x128xf32> -> vector<8x128xf32>
    %300 = arith.addf %298, %299 : vector<8x128xf32>
    %301 = vector.extract_strided_slice %300 {offsets = [0, 0], sizes = [8, 32], strides = [1, 1]} : vector<8x128xf32> to vector<8x32xf32>
    %302 = arith.negf %301 : vector<8x32xf32>
    %303 = math.exp %302 : vector<8x32xf32>
    %cst_59 = arith.constant 1.000000e+00 : f32
    %304 = vector.broadcast %cst_59 : f32 to vector<8x32xf32>
    %305 = arith.addf %304, %303 : vector<8x32xf32>
    %306 = arith.divf %304, %305 : vector<8x32xf32>
    %307 = vector.extract_strided_slice %300 {offsets = [0, 32], sizes = [8, 32], strides = [1, 1]} : vector<8x128xf32> to vector<8x32xf32>
    %308 = arith.negf %307 : vector<8x32xf32>
    %309 = math.exp %308 : vector<8x32xf32>
    %cst_60 = arith.constant 1.000000e+00 : f32
    %310 = vector.broadcast %cst_60 : f32 to vector<8x32xf32>
    %311 = arith.addf %310, %309 : vector<8x32xf32>
    %312 = arith.divf %310, %311 : vector<8x32xf32>
    %313 = vector.extract_strided_slice %300 {offsets = [0, 64], sizes = [8, 32], strides = [1, 1]} : vector<8x128xf32> to vector<8x32xf32>
    %314 = math.tanh %313 : vector<8x32xf32>
    %315 = vector.extract_strided_slice %300 {offsets = [0, 96], sizes = [8, 32], strides = [1, 1]} : vector<8x128xf32> to vector<8x32xf32>
    %316 = arith.negf %315 : vector<8x32xf32>
    %317 = math.exp %316 : vector<8x32xf32>
    %cst_61 = arith.constant 1.000000e+00 : f32
    %318 = vector.broadcast %cst_61 : f32 to vector<8x32xf32>
    %319 = arith.addf %318, %317 : vector<8x32xf32>
    %320 = arith.divf %318, %319 : vector<8x32xf32>
    %321 = arith.mulf %312, %295 : vector<8x32xf32>
    %322 = arith.mulf %306, %314 : vector<8x32xf32>
    %323 = arith.addf %321, %322 : vector<8x32xf32>
    %324 = math.tanh %323 : vector<8x32xf32>
    %325 = arith.mulf %320, %324 : vector<8x32xf32>
    %326 = vector.extract_strided_slice %239 {offsets = [24, 0], sizes = [8, 128], strides = [1, 1]} : vector<64x128xf32> to vector<8x128xf32>
    %cst_62 = arith.constant dense<0.000000e+00> : vector<8x128xf32>
    %327 = tpu.matmul %325, %235, %cst_62 {dimension_numbers = #tpu.dot_dimension_numbers<[1], [0], [0], [1], [0, 0, 1, 1], [], []>} : vector<8x32xf32>, vector<32x128xf32>, vector<8x128xf32> -> vector<8x128xf32>
    %328 = arith.addf %326, %327 : vector<8x128xf32>
    %329 = vector.extract_strided_slice %328 {offsets = [0, 0], sizes = [8, 32], strides = [1, 1]} : vector<8x128xf32> to vector<8x32xf32>
    %330 = arith.negf %329 : vector<8x32xf32>
    %331 = math.exp %330 : vector<8x32xf32>
    %cst_63 = arith.constant 1.000000e+00 : f32
    %332 = vector.broadcast %cst_63 : f32 to vector<8x32xf32>
    %333 = arith.addf %332, %331 : vector<8x32xf32>
    %334 = arith.divf %332, %333 : vector<8x32xf32>
    %335 = vector.extract_strided_slice %328 {offsets = [0, 32], sizes = [8, 32], strides = [1, 1]} : vector<8x128xf32> to vector<8x32xf32>
    %336 = arith.negf %335 : vector<8x32xf32>
    %337 = math.exp %336 : vector<8x32xf32>
    %cst_64 = arith.constant 1.000000e+00 : f32
    %338 = vector.broadcast %cst_64 : f32 to vector<8x32xf32>
    %339 = arith.addf %338, %337 : vector<8x32xf32>
    %340 = arith.divf %338, %339 : vector<8x32xf32>
    %341 = vector.extract_strided_slice %328 {offsets = [0, 64], sizes = [8, 32], strides = [1, 1]} : vector<8x128xf32> to vector<8x32xf32>
    %342 = math.tanh %341 : vector<8x32xf32>
    %343 = vector.extract_strided_slice %328 {offsets = [0, 96], sizes = [8, 32], strides = [1, 1]} : vector<8x128xf32> to vector<8x32xf32>
    %344 = arith.negf %343 : vector<8x32xf32>
    %345 = math.exp %344 : vector<8x32xf32>
    %cst_65 = arith.constant 1.000000e+00 : f32
    %346 = vector.broadcast %cst_65 : f32 to vector<8x32xf32>
    %347 = arith.addf %346, %345 : vector<8x32xf32>
    %348 = arith.divf %346, %347 : vector<8x32xf32>
    %349 = arith.mulf %340, %323 : vector<8x32xf32>
    %350 = arith.mulf %334, %342 : vector<8x32xf32>
    %351 = arith.addf %349, %350 : vector<8x32xf32>
    %352 = math.tanh %351 : vector<8x32xf32>
    %353 = arith.mulf %348, %352 : vector<8x32xf32>
    %354 = vector.extract_strided_slice %239 {offsets = [32, 0], sizes = [8, 128], strides = [1, 1]} : vector<64x128xf32> to vector<8x128xf32>
    %cst_66 = arith.constant dense<0.000000e+00> : vector<8x128xf32>
    %355 = tpu.matmul %353, %235, %cst_66 {dimension_numbers = #tpu.dot_dimension_numbers<[1], [0], [0], [1], [0, 0, 1, 1], [], []>} : vector<8x32xf32>, vector<32x128xf32>, vector<8x128xf32> -> vector<8x128xf32>
    %356 = arith.addf %354, %355 : vector<8x128xf32>
    %357 = vector.extract_strided_slice %356 {offsets = [0, 0], sizes = [8, 32], strides = [1, 1]} : vector<8x128xf32> to vector<8x32xf32>
    %358 = arith.negf %357 : vector<8x32xf32>
    %359 = math.exp %358 : vector<8x32xf32>
    %cst_67 = arith.constant 1.000000e+00 : f32
    %360 = vector.broadcast %cst_67 : f32 to vector<8x32xf32>
    %361 = arith.addf %360, %359 : vector<8x32xf32>
    %362 = arith.divf %360, %361 : vector<8x32xf32>
    %363 = vector.extract_strided_slice %356 {offsets = [0, 32], sizes = [8, 32], strides = [1, 1]} : vector<8x128xf32> to vector<8x32xf32>
    %364 = arith.negf %363 : vector<8x32xf32>
    %365 = math.exp %364 : vector<8x32xf32>
    %cst_68 = arith.constant 1.000000e+00 : f32
    %366 = vector.broadcast %cst_68 : f32 to vector<8x32xf32>
    %367 = arith.addf %366, %365 : vector<8x32xf32>
    %368 = arith.divf %366, %367 : vector<8x32xf32>
    %369 = vector.extract_strided_slice %356 {offsets = [0, 64], sizes = [8, 32], strides = [1, 1]} : vector<8x128xf32> to vector<8x32xf32>
    %370 = math.tanh %369 : vector<8x32xf32>
    %371 = vector.extract_strided_slice %356 {offsets = [0, 96], sizes = [8, 32], strides = [1, 1]} : vector<8x128xf32> to vector<8x32xf32>
    %372 = arith.negf %371 : vector<8x32xf32>
    %373 = math.exp %372 : vector<8x32xf32>
    %cst_69 = arith.constant 1.000000e+00 : f32
    %374 = vector.broadcast %cst_69 : f32 to vector<8x32xf32>
    %375 = arith.addf %374, %373 : vector<8x32xf32>
    %376 = arith.divf %374, %375 : vector<8x32xf32>
    %377 = arith.mulf %368, %351 : vector<8x32xf32>
    %378 = arith.mulf %362, %370 : vector<8x32xf32>
    %379 = arith.addf %377, %378 : vector<8x32xf32>
    %380 = math.tanh %379 : vector<8x32xf32>
    %381 = arith.mulf %376, %380 : vector<8x32xf32>
    %382 = vector.extract_strided_slice %239 {offsets = [40, 0], sizes = [8, 128], strides = [1, 1]} : vector<64x128xf32> to vector<8x128xf32>
    %cst_70 = arith.constant dense<0.000000e+00> : vector<8x128xf32>
    %383 = tpu.matmul %381, %235, %cst_70 {dimension_numbers = #tpu.dot_dimension_numbers<[1], [0], [0], [1], [0, 0, 1, 1], [], []>} : vector<8x32xf32>, vector<32x128xf32>, vector<8x128xf32> -> vector<8x128xf32>
    %384 = arith.addf %382, %383 : vector<8x128xf32>
    %385 = vector.extract_strided_slice %384 {offsets = [0, 0], sizes = [8, 32], strides = [1, 1]} : vector<8x128xf32> to vector<8x32xf32>
    %386 = arith.negf %385 : vector<8x32xf32>
    %387 = math.exp %386 : vector<8x32xf32>
    %cst_71 = arith.constant 1.000000e+00 : f32
    %388 = vector.broadcast %cst_71 : f32 to vector<8x32xf32>
    %389 = arith.addf %388, %387 : vector<8x32xf32>
    %390 = arith.divf %388, %389 : vector<8x32xf32>
    %391 = vector.extract_strided_slice %384 {offsets = [0, 32], sizes = [8, 32], strides = [1, 1]} : vector<8x128xf32> to vector<8x32xf32>
    %392 = arith.negf %391 : vector<8x32xf32>
    %393 = math.exp %392 : vector<8x32xf32>
    %cst_72 = arith.constant 1.000000e+00 : f32
    %394 = vector.broadcast %cst_72 : f32 to vector<8x32xf32>
    %395 = arith.addf %394, %393 : vector<8x32xf32>
    %396 = arith.divf %394, %395 : vector<8x32xf32>
    %397 = vector.extract_strided_slice %384 {offsets = [0, 64], sizes = [8, 32], strides = [1, 1]} : vector<8x128xf32> to vector<8x32xf32>
    %398 = math.tanh %397 : vector<8x32xf32>
    %399 = vector.extract_strided_slice %384 {offsets = [0, 96], sizes = [8, 32], strides = [1, 1]} : vector<8x128xf32> to vector<8x32xf32>
    %400 = arith.negf %399 : vector<8x32xf32>
    %401 = math.exp %400 : vector<8x32xf32>
    %cst_73 = arith.constant 1.000000e+00 : f32
    %402 = vector.broadcast %cst_73 : f32 to vector<8x32xf32>
    %403 = arith.addf %402, %401 : vector<8x32xf32>
    %404 = arith.divf %402, %403 : vector<8x32xf32>
    %405 = arith.mulf %396, %379 : vector<8x32xf32>
    %406 = arith.mulf %390, %398 : vector<8x32xf32>
    %407 = arith.addf %405, %406 : vector<8x32xf32>
    %408 = math.tanh %407 : vector<8x32xf32>
    %409 = arith.mulf %404, %408 : vector<8x32xf32>
    %410 = vector.extract_strided_slice %239 {offsets = [48, 0], sizes = [8, 128], strides = [1, 1]} : vector<64x128xf32> to vector<8x128xf32>
    %cst_74 = arith.constant dense<0.000000e+00> : vector<8x128xf32>
    %411 = tpu.matmul %409, %235, %cst_74 {dimension_numbers = #tpu.dot_dimension_numbers<[1], [0], [0], [1], [0, 0, 1, 1], [], []>} : vector<8x32xf32>, vector<32x128xf32>, vector<8x128xf32> -> vector<8x128xf32>
    %412 = arith.addf %410, %411 : vector<8x128xf32>
    %413 = vector.extract_strided_slice %412 {offsets = [0, 0], sizes = [8, 32], strides = [1, 1]} : vector<8x128xf32> to vector<8x32xf32>
    %414 = arith.negf %413 : vector<8x32xf32>
    %415 = math.exp %414 : vector<8x32xf32>
    %cst_75 = arith.constant 1.000000e+00 : f32
    %416 = vector.broadcast %cst_75 : f32 to vector<8x32xf32>
    %417 = arith.addf %416, %415 : vector<8x32xf32>
    %418 = arith.divf %416, %417 : vector<8x32xf32>
    %419 = vector.extract_strided_slice %412 {offsets = [0, 32], sizes = [8, 32], strides = [1, 1]} : vector<8x128xf32> to vector<8x32xf32>
    %420 = arith.negf %419 : vector<8x32xf32>
    %421 = math.exp %420 : vector<8x32xf32>
    %cst_76 = arith.constant 1.000000e+00 : f32
    %422 = vector.broadcast %cst_76 : f32 to vector<8x32xf32>
    %423 = arith.addf %422, %421 : vector<8x32xf32>
    %424 = arith.divf %422, %423 : vector<8x32xf32>
    %425 = vector.extract_strided_slice %412 {offsets = [0, 64], sizes = [8, 32], strides = [1, 1]} : vector<8x128xf32> to vector<8x32xf32>
    %426 = math.tanh %425 : vector<8x32xf32>
    %427 = vector.extract_strided_slice %412 {offsets = [0, 96], sizes = [8, 32], strides = [1, 1]} : vector<8x128xf32> to vector<8x32xf32>
    %428 = arith.negf %427 : vector<8x32xf32>
    %429 = math.exp %428 : vector<8x32xf32>
    %cst_77 = arith.constant 1.000000e+00 : f32
    %430 = vector.broadcast %cst_77 : f32 to vector<8x32xf32>
    %431 = arith.addf %430, %429 : vector<8x32xf32>
    %432 = arith.divf %430, %431 : vector<8x32xf32>
    %433 = arith.mulf %424, %407 : vector<8x32xf32>
    %434 = arith.mulf %418, %426 : vector<8x32xf32>
    %435 = arith.addf %433, %434 : vector<8x32xf32>
    %436 = math.tanh %435 : vector<8x32xf32>
    %437 = arith.mulf %432, %436 : vector<8x32xf32>
    %438 = vector.extract_strided_slice %239 {offsets = [56, 0], sizes = [8, 128], strides = [1, 1]} : vector<64x128xf32> to vector<8x128xf32>
    %cst_78 = arith.constant dense<0.000000e+00> : vector<8x128xf32>
    %439 = tpu.matmul %437, %235, %cst_78 {dimension_numbers = #tpu.dot_dimension_numbers<[1], [0], [0], [1], [0, 0, 1, 1], [], []>} : vector<8x32xf32>, vector<32x128xf32>, vector<8x128xf32> -> vector<8x128xf32>
    %440 = arith.addf %438, %439 : vector<8x128xf32>
    %441 = vector.extract_strided_slice %440 {offsets = [0, 0], sizes = [8, 32], strides = [1, 1]} : vector<8x128xf32> to vector<8x32xf32>
    %442 = arith.negf %441 : vector<8x32xf32>
    %443 = math.exp %442 : vector<8x32xf32>
    %cst_79 = arith.constant 1.000000e+00 : f32
    %444 = vector.broadcast %cst_79 : f32 to vector<8x32xf32>
    %445 = arith.addf %444, %443 : vector<8x32xf32>
    %446 = arith.divf %444, %445 : vector<8x32xf32>
    %447 = vector.extract_strided_slice %440 {offsets = [0, 32], sizes = [8, 32], strides = [1, 1]} : vector<8x128xf32> to vector<8x32xf32>
    %448 = arith.negf %447 : vector<8x32xf32>
    %449 = math.exp %448 : vector<8x32xf32>
    %cst_80 = arith.constant 1.000000e+00 : f32
    %450 = vector.broadcast %cst_80 : f32 to vector<8x32xf32>
    %451 = arith.addf %450, %449 : vector<8x32xf32>
    %452 = arith.divf %450, %451 : vector<8x32xf32>
    %453 = vector.extract_strided_slice %440 {offsets = [0, 64], sizes = [8, 32], strides = [1, 1]} : vector<8x128xf32> to vector<8x32xf32>
    %454 = math.tanh %453 : vector<8x32xf32>
    %455 = vector.extract_strided_slice %440 {offsets = [0, 96], sizes = [8, 32], strides = [1, 1]} : vector<8x128xf32> to vector<8x32xf32>
    %456 = arith.negf %455 : vector<8x32xf32>
    %457 = math.exp %456 : vector<8x32xf32>
    %cst_81 = arith.constant 1.000000e+00 : f32
    %458 = vector.broadcast %cst_81 : f32 to vector<8x32xf32>
    %459 = arith.addf %458, %457 : vector<8x32xf32>
    %460 = arith.divf %458, %459 : vector<8x32xf32>
    %461 = arith.mulf %452, %435 : vector<8x32xf32>
    %462 = arith.mulf %446, %454 : vector<8x32xf32>
    %463 = arith.addf %461, %462 : vector<8x32xf32>
    %464 = math.tanh %463 : vector<8x32xf32>
    %465 = arith.mulf %460, %464 : vector<8x32xf32>
    %466 = tpu.concatenate %269, %297, %325, %353, %381, %409, %437, %465 in 0 : vector<8x32xf32>, vector<8x32xf32>, vector<8x32xf32>, vector<8x32xf32>, vector<8x32xf32>, vector<8x32xf32>, vector<8x32xf32>, vector<8x32xf32> -> vector<64x32xf32>
    %c0_82 = arith.constant 0 : index
    %c0_83 = arith.constant 0 : index
    %467 = vector.load %arg8[%c0_82, %c0_83] : memref<32x128xf32, #tpu.memory_space<vmem>>, vector<32x128xf32>
    %cst_84 = arith.constant dense<0.000000e+00> : vector<64x128xf32>
    %468 = tpu.matmul %466, %467, %cst_84 {dimension_numbers = #tpu.dot_dimension_numbers<[1], [0], [0], [1], [0, 0, 1, 1], [], []>} : vector<64x32xf32>, vector<32x128xf32>, vector<64x128xf32> -> vector<64x128xf32>
    %c0_85 = arith.constant 0 : index
    %c0_86 = arith.constant 0 : index
    %469 = vector.load %arg9[%c0_85, %c0_86] : memref<1x128xf32, #tpu.memory_space<vmem>>, vector<1x128xf32>
    %470 = vector.broadcast %469 : vector<1x128xf32> to vector<64x128xf32>
    %471 = arith.addf %468, %470 : vector<64x128xf32>
    %cst_87 = arith.constant 0.000000e+00 : f32
    %472 = vector.broadcast %cst_87 : f32 to vector<64x128xf32>
    %473 = arith.maximumf %471, %472 : vector<64x128xf32>
    %c0_88 = arith.constant 0 : index
    %c0_89 = arith.constant 0 : index
    %474 = vector.load %arg10[%c0_88, %c0_89] : memref<128x128xf32, #tpu.memory_space<vmem>>, vector<128x128xf32>
    %cst_90 = arith.constant dense<0.000000e+00> : vector<64x128xf32>
    %475 = tpu.matmul %473, %474, %cst_90 {dimension_numbers = #tpu.dot_dimension_numbers<[1], [0], [0], [1], [0, 0, 1, 1], [], []>} : vector<64x128xf32>, vector<128x128xf32>, vector<64x128xf32> -> vector<64x128xf32>
    %c0_91 = arith.constant 0 : index
    %c0_92 = arith.constant 0 : index
    %476 = vector.load %arg11[%c0_91, %c0_92] : memref<1x128xf32, #tpu.memory_space<vmem>>, vector<1x128xf32>
    %477 = vector.broadcast %476 : vector<1x128xf32> to vector<64x128xf32>
    %478 = arith.addf %475, %477 : vector<64x128xf32>
    %cst_93 = arith.constant 0.000000e+00 : f32
    %479 = vector.broadcast %cst_93 : f32 to vector<64x128xf32>
    %480 = arith.maximumf %478, %479 : vector<64x128xf32>
    %c0_94 = arith.constant 0 : index
    %c0_95 = arith.constant 0 : index
    %481 = vector.load %arg12[%c0_94, %c0_95] : memref<128x128xf32, #tpu.memory_space<vmem>>, vector<128x128xf32>
    %cst_96 = arith.constant dense<0.000000e+00> : vector<64x128xf32>
    %482 = tpu.matmul %480, %481, %cst_96 {dimension_numbers = #tpu.dot_dimension_numbers<[1], [0], [0], [1], [0, 0, 1, 1], [], []>} : vector<64x128xf32>, vector<128x128xf32>, vector<64x128xf32> -> vector<64x128xf32>
    %c0_97 = arith.constant 0 : index
    %c0_98 = arith.constant 0 : index
    %483 = vector.load %arg13[%c0_97, %c0_98] : memref<1x128xf32, #tpu.memory_space<vmem>>, vector<1x128xf32>
    %484 = vector.broadcast %483 : vector<1x128xf32> to vector<64x128xf32>
    %485 = arith.addf %482, %484 : vector<64x128xf32>
    %486 = arith.negf %485 : vector<64x128xf32>
    %487 = math.exp %486 : vector<64x128xf32>
    %cst_99 = arith.constant 1.000000e+00 : f32
    %488 = vector.broadcast %cst_99 : f32 to vector<64x128xf32>
    %489 = arith.addf %488, %487 : vector<64x128xf32>
    %490 = arith.divf %488, %489 : vector<64x128xf32>
    %c0_100 = arith.constant 0 : index
    %c0_101 = arith.constant 0 : index
    %491 = vector.load %arg14[%c0_100, %c0_101] : memref<64x128xf32, #tpu.memory_space<vmem>>, vector<64x128xf32>
    tpu.vector_store %arg14[%c0_100, %c0_101], %490 {strides = array<i32>} : memref<64x128xf32, #tpu.memory_space<vmem>>, vector<64x128xf32>,
    return
  }
  func.func @transform_0(%arg0: i32) -> (i32, i32) {
    %c0_i32 = arith.constant 0 : i32
    %c0_i32_0 = arith.constant 0 : i32
    %c0_i32_1 = arith.constant 0 : i32
    return %c0_i32, %c0_i32_0 : i32, i32
  }
  func.func @transform_1(%arg0: i32) -> (i32, i32) {
    %c0_i32 = arith.constant 0 : i32
    %c0_i32_0 = arith.constant 0 : i32
    %c0_i32_1 = arith.constant 0 : i32
    return %c0_i32, %c0_i32_0 : i32, i32
  }
  func.func @transform_2(%arg0: i32) -> (i32, i32) {
    %c0_i32 = arith.constant 0 : i32
    %c0_i32_0 = arith.constant 0 : i32
    %c0_i32_1 = arith.constant 0 : i32
    return %c0_i32, %c0_i32_0 : i32, i32
  }
  func.func @transform_3(%arg0: i32) -> (i32, i32) {
    %c0_i32 = arith.constant 0 : i32
    %c0_i32_0 = arith.constant 0 : i32
    %c0_i32_1 = arith.constant 0 : i32
    return %c0_i32, %c0_i32_0 : i32, i32
  }
  func.func @transform_4(%arg0: i32) -> (i32, i32) {
    %c0_i32 = arith.constant 0 : i32
    %c0_i32_0 = arith.constant 0 : i32
    %c0_i32_1 = arith.constant 0 : i32
    return %c0_i32, %c0_i32_0 : i32, i32
  }
  func.func @transform_5(%arg0: i32) -> (i32, i32) {
    %c0_i32 = arith.constant 0 : i32
    %c0_i32_0 = arith.constant 0 : i32
    %c0_i32_1 = arith.constant 0 : i32
    return %c0_i32, %c0_i32_0 : i32, i32
  }
  func.func @transform_6(%arg0: i32) -> (i32, i32) {
    %c0_i32 = arith.constant 0 : i32
    %c0_i32_0 = arith.constant 0 : i32
    %c0_i32_1 = arith.constant 0 : i32
    return %c0_i32, %c0_i32_0 : i32, i32
  }
  func.func @transform_7(%arg0: i32) -> (i32, i32) {
    %c0_i32 = arith.constant 0 : i32
    %c0_i32_0 = arith.constant 0 : i32
    %c0_i32_1 = arith.constant 0 : i32
    return %c0_i32, %c0_i32_0 : i32, i32
  }
  func.func @transform_8(%arg0: i32) -> (i32, i32) {
    %c0_i32 = arith.constant 0 : i32
    %c0_i32_0 = arith.constant 0 : i32
    %c0_i32_1 = arith.constant 0 : i32
    return %c0_i32, %c0_i32_0 : i32, i32
  }
  func.func @transform_9(%arg0: i32) -> (i32, i32) {
    %c0_i32 = arith.constant 0 : i32
    %c0_i32_0 = arith.constant 0 : i32
    %c0_i32_1 = arith.constant 0 : i32
    return %c0_i32, %c0_i32_0 : i32, i32
  }
  func.func @transform_10(%arg0: i32) -> (i32, i32) {
    %c0_i32 = arith.constant 0 : i32
    %c0_i32_0 = arith.constant 0 : i32
    %c0_i32_1 = arith.constant 0 : i32
    return %c0_i32, %c0_i32_0 : i32, i32
  }
  func.func @transform_11(%arg0: i32) -> (i32, i32) {
    %c0_i32 = arith.constant 0 : i32
    %c0_i32_0 = arith.constant 0 : i32
    %c0_i32_1 = arith.constant 0 : i32
    return %c0_i32, %c0_i32_0 : i32, i32
  }
  func.func @transform_12(%arg0: i32) -> (i32, i32) {
    %c0_i32 = arith.constant 0 : i32
    %c0_i32_0 = arith.constant 0 : i32
    %c0_i32_1 = arith.constant 0 : i32
    return %c0_i32, %c0_i32_0 : i32, i32
  }
  func.func @transform_13(%arg0: i32) -> (i32, i32) {
    %c0_i32 = arith.constant 0 : i32
    %c0_i32_0 = arith.constant 0 : i32
    %c0_i32_1 = arith.constant 0 : i32
    return %c0_i32, %c0_i32_0 : i32, i32
  }
}

</mosaic_0001>

<llo_original>
// kernel: tpu_custom_call.1
$region0: #{tpu_custom_call.1}
  #allocation0 [shape = 'u32[]', space=smem, size = 0x4, offset = 0x4, fixed_abs, tag = 'smem constant byte address 0x4 - core index']
  #allocation1 [shape = 'u32[72,128]{1,0:T(1,128)}', space=vmem, size = 0x9000, scoped, tag = 'internal scratch']
  %s0 = inlined_call_operand.vmem [shape: f32[64,4], index: 0, kind: input, shape index: {}]
  %s1 = inlined_call_operand.vmem [shape: f32[4,128], index: 1, kind: input, shape index: {}]
  %s2 = inlined_call_operand.vmem [shape: f32[32,128], index: 2, kind: input, shape index: {}]
  %s3 = inlined_call_operand.vmem [shape: f32[1,128], index: 3, kind: input, shape index: {}]
  %s4 = inlined_call_operand.vmem [shape: f32[32,128], index: 4, kind: input, shape index: {}]
  %s5 = inlined_call_operand.hbm [shape: f32[32,128], index: 5, kind: input, shape index: {}]
  %s6 = inlined_call_operand.vmem [shape: f32[1,128], index: 6, kind: input, shape index: {}]
  %s7 = inlined_call_operand.hbm [shape: f32[32,128], index: 7, kind: input, shape index: {}]
  %s8 = inlined_call_operand.vmem [shape: f32[1,128], index: 8, kind: input, shape index: {}]
  %s9 = inlined_call_operand.hbm [shape: f32[128,128], index: 9, kind: input, shape index: {}]
  %s10 = inlined_call_operand.vmem [shape: f32[1,128], index: 10, kind: input, shape index: {}]
  %s11 = inlined_call_operand.hbm [shape: f32[128,128], index: 11, kind: input, shape index: {}]
  %s12 = inlined_call_operand.vmem [shape: f32[1,128], index: 12, kind: input, shape index: {}]
  %s13 = inlined_call_operand.hbm [shape: f32[64,128], index: 13, kind: output, shape index: {}]
  %s14 = sld [smem:[#allocation0]]
  $region78: #{tpu_custom_call.1} parent=0
    _
  %s16 = ssub.s32 1, %s14
  %s17 = scalar_select 0, %s16, %s14
  $region1: #{tpu_custom_call.1} parent=0
    #allocation2 [shape = 'u8[16384]{0}', space=vmem, size = 0x4000, scoped, tag = 'input window, operand 5, single buffered']
    #allocation3 [shape = 's32[1]{0}', space=sflag, size = 0x4, scoped, tag = 'scoped memory for tpu_custom_call.1']
    #allocation4 [shape = 's32[1]{0}', space=sflag, size = 0x4, scoped, tag = 'scoped memory for tpu_custom_call.1']
    #allocation5 [shape = 'u8[16384]{0}', space=vmem, size = 0x4000, scoped, tag = 'input window, operand 7, single buffered']
    #allocation6 [shape = 's32[1]{0}', space=sflag, size = 0x4, scoped, tag = 'scoped memory for tpu_custom_call.1']
    #allocation7 [shape = 'u8[65536]{0}', space=vmem, size = 0x10000, scoped, tag = 'input window, operand 9, single buffered']
    #allocation8 [shape = 'u8[65536]{0}', space=vmem, size = 0x10000, scoped, tag = 'input window, operand 11, single buffered']
    #allocation9 [shape = 's32[1]{0}', space=sflag, size = 0x4, scoped, tag = 'scoped memory for tpu_custom_call.1']
    #allocation10 [shape = 'u8[32768]{0}', space=vmem, size = 0x8000, scoped, tag = 'output window, operand 0, single buffered']
    %18 = vsyncpa [#allocation3], 0
    %19 = vsyncpa [#allocation6], 0
    %20 = vsyncpa [#allocation9], 0
    %21 = vsyncpa [#allocation4], 0
    // Predicated region
    $region2: #{tpu_custom_call.1} parent=1 // pred_check
      _
    $region3: #{tpu_custom_call.1} parent=1 // pred_check_branch
      %23 = sbr.rel (0) target = $region5
    $region4: #{tpu_custom_call.1} parent=1 // pred_region
      _
    $region5: #{tpu_custom_call.1} parent=1 // pred_fallthru
      _
    // Predicated region
    $region6: #{tpu_custom_call.1} parent=1 // pred_check
      _
    $region7: #{tpu_custom_call.1} parent=1 // pred_check_branch
      %25 = sbr.rel (0) target = $region9
    $region8: #{tpu_custom_call.1} parent=1 // pred_region
      _
    $region9: #{tpu_custom_call.1} parent=1 // pred_fallthru
      _
    // Predicated region
    $region10: #{tpu_custom_call.1} parent=1 // pred_check
      _
    $region11: #{tpu_custom_call.1} parent=1 // pred_check_branch
      %27 = sbr.rel (0) target = $region13
    $region12: #{tpu_custom_call.1} parent=1 // pred_region
      _
    $region13: #{tpu_custom_call.1} parent=1 // pred_fallthru
      _
    // Predicated region
    $region14: #{tpu_custom_call.1} parent=1 // pred_check
      _
    $region15: #{tpu_custom_call.1} parent=1 // pred_check_branch
      %29 = sbr.rel (0) target = $region17
    $region16: #{tpu_custom_call.1} parent=1 // pred_region
      _
    $region17: #{tpu_custom_call.1} parent=1 // pred_fallthru
      _
    // Predicated region
    $region18: #{tpu_custom_call.1} parent=1 // pred_check
      _
    $region19: #{tpu_custom_call.1} parent=1 // pred_check_branch
      %31 = sbr.rel (0) target = $region21
    $region20: #{tpu_custom_call.1} parent=1 // pred_region
      _
    $region21: #{tpu_custom_call.1} parent=1 // pred_fallthru
      _
    // Predicated region
    $region22: #{tpu_custom_call.1} parent=1 // pred_check
      _
    $region23: #{tpu_custom_call.1} parent=1 // pred_check_branch
      %33 = sbr.rel (0) target = $region25
    $region24: #{tpu_custom_call.1} parent=1 // pred_region
      %35 = vsyncadd [#allocation3], 0
      %s36 = sshll.u32 %s5, 4
      %s37 = int_to_ptr.hbm [resolvable:$true] %s36
      %s38 = sshll.u32 [#allocation2], 4
      %s39 = int_to_ptr.vmem [resolvable:$true] %s38
      %44 = dma.hbm_to_vmem [thread:$0]  %s37, 512, %s39, [#allocation3], 128, 128, 8
    $region25: #{tpu_custom_call.1} parent=1 // pred_fallthru
      _
    // Predicated region
    $region26: #{tpu_custom_call.1} parent=1 // pred_check
      _
    $region27: #{tpu_custom_call.1} parent=1 // pred_check_branch
      %46 = sbr.rel (0) target = $region29
    $region28: #{tpu_custom_call.1} parent=1 // pred_region
      _
    $region29: #{tpu_custom_call.1} parent=1 // pred_fallthru
      _
    // Predicated region
    $region30: #{tpu_custom_call.1} parent=1 // pred_check
      _
    $region31: #{tpu_custom_call.1} parent=1 // pred_check_branch
      %48 = sbr.rel (0) target = $region33
    $region32: #{tpu_custom_call.1} parent=1 // pred_region
      %50 = vsyncadd [#allocation6], 0
      %s51 = sshll.u32 %s7, 4
      %s52 = int_to_ptr.hbm [resolvable:$true] %s51
      %s53 = sshll.u32 [#allocation5], 4
      %s54 = int_to_ptr.vmem [resolvable:$true] %s53
      %59 = dma.hbm_to_vmem [thread:$0]  %s52, 512, %s54, [#allocation6], 128, 128, 8
    $region33: #{tpu_custom_call.1} parent=1 // pred_fallthru
      _
    // Predicated region
    $region34: #{tpu_custom_call.1} parent=1 // pred_check
      _
    $region35: #{tpu_custom_call.1} parent=1 // pred_check_branch
      %61 = sbr.rel (0) target = $region37
    $region36: #{tpu_custom_call.1} parent=1 // pred_region
      _
    $region37: #{tpu_custom_call.1} parent=1 // pred_fallthru
      _
    // Predicated region
    $region38: #{tpu_custom_call.1} parent=1 // pred_check
      _
    $region39: #{tpu_custom_call.1} parent=1 // pred_check_branch
      %63 = sbr.rel (0) target = $region41
    $region40: #{tpu_custom_call.1} parent=1 // pred_region
      %65 = vsyncadd [#allocation6], 0
      %s66 = sshll.u32 %s9, 4
      %s67 = int_to_ptr.hbm [resolvable:$true] %s66
      %s68 = sshll.u32 [#allocation7], 4
      %s69 = int_to_ptr.vmem [resolvable:$true] %s68
      %74 = dma.hbm_to_vmem [thread:$0]  %s67, 2048, %s69, [#allocation6], 128, 128, 8
    $region41: #{tpu_custom_call.1} parent=1 // pred_fallthru
      _
    // Predicated region
    $region42: #{tpu_custom_call.1} parent=1 // pred_check
      _
    $region43: #{tpu_custom_call.1} parent=1 // pred_check_branch
      %76 = sbr.rel (0) target = $region45
    $region44: #{tpu_custom_call.1} parent=1 // pred_region
      _
    $region45: #{tpu_custom_call.1} parent=1 // pred_fallthru
      _
    // Predicated region
    $region46: #{tpu_custom_call.1} parent=1 // pred_check
      _
    $region47: #{tpu_custom_call.1} parent=1 // pred_check_branch
      %78 = sbr.rel (0) target = $region49
    $region48: #{tpu_custom_call.1} parent=1 // pred_region
      %80 = vsyncadd [#allocation9], 0
      %s81 = sshll.u32 %s11, 4
      %s82 = int_to_ptr.hbm [resolvable:$true] %s81
      %s83 = sshll.u32 [#allocation8], 4
      %s84 = int_to_ptr.vmem [resolvable:$true] %s83
      %89 = dma.hbm_to_vmem [thread:$0]  %s82, 2048, %s84, [#allocation9], 128, 128, 8
    $region49: #{tpu_custom_call.1} parent=1 // pred_fallthru
      _
    // Predicated region
    $region50: #{tpu_custom_call.1} parent=1 // pred_check
      _
    $region51: #{tpu_custom_call.1} parent=1 // pred_check_branch
      %91 = sbr.rel (0) target = $region53
    $region52: #{tpu_custom_call.1} parent=1 // pred_region
      _
    $region53: #{tpu_custom_call.1} parent=1 // pred_fallthru
      _
    // Predicated region
    $region54: #{tpu_custom_call.1} parent=1 // pred_check
      _
    $region55: #{tpu_custom_call.1} parent=1 // pred_check_branch
      %93 = sbr.rel (0) target = $region57
    $region56: #{tpu_custom_call.1} parent=1 // pred_region
      %95 = dma.done [#allocation3], 512
    $region57: #{tpu_custom_call.1} parent=1 // pred_fallthru
      _
    // Predicated region
    $region58: #{tpu_custom_call.1} parent=1 // pred_check
      _
    $region59: #{tpu_custom_call.1} parent=1 // pred_check_branch
      %97 = sbr.rel (0) target = $region61
    $region60: #{tpu_custom_call.1} parent=1 // pred_region
      %99 = dma.done [#allocation6], 512
    $region61: #{tpu_custom_call.1} parent=1 // pred_fallthru
      _
    // Predicated region
    $region62: #{tpu_custom_call.1} parent=1 // pred_check
      _
    $region63: #{tpu_custom_call.1} parent=1 // pred_check_branch
      %101 = sbr.rel (0) target = $region65
    $region64: #{tpu_custom_call.1} parent=1 // pred_region
      %103 = dma.done [#allocation6], 2048
    $region65: #{tpu_custom_call.1} parent=1 // pred_fallthru
      _
    // Predicated region
    $region66: #{tpu_custom_call.1} parent=1 // pred_check
      _
    $region67: #{tpu_custom_call.1} parent=1 // pred_check_branch
      %105 = sbr.rel (0) target = $region69
    $region68: #{tpu_custom_call.1} parent=1 // pred_region
      %107 = dma.done [#allocation9], 2048
    $region69: #{tpu_custom_call.1} parent=1 // pred_fallthru
      _
    %v108 = vld [vmem:[%s0] sm:$0xff]
    %v109 = vld [vmem:[%s0 + $0x8] sm:$0xff]
    %v110 = vld [vmem:[%s0 + $0x10] sm:$0xff]
    %v111 = vld [vmem:[%s0 + $0x18] sm:$0xff]
    %v112 = vld [vmem:[%s0 + $0x20] sm:$0xff]
    %v113 = vld [vmem:[%s0 + $0x28] sm:$0xff]
    %v114 = vld [vmem:[%s0 + $0x30] sm:$0xff]
    %v115 = vld [vmem:[%s0 + $0x38] sm:$0xff]
    %v116 = vld [vmem:[%s1] sm:$0xf]
    %v117 = vld [vmem:[%s2] sm:$0xff]
    %v118 = vld [vmem:[%s2 + $0x8] sm:$0xff]
    %v119 = vld [vmem:[%s2 + $0x10] sm:$0xff]
    %v120 = vld [vmem:[%s2 + $0x18] sm:$0xff]
    %v121 = vld [vmem:[%s3] sm:$0x1]
    %v123 = vperm.slane %v121, 0
    %vm125 = vcmask 31744
    %v127 = vsel %vm125, %v108, 0
    %v130 = vsel %vm125, %v109, 0
    %v133 = vsel %vm125, %v110, 0
    %v136 = vsel %vm125, %v111, 0
    %v139 = vsel %vm125, %v112, 0
    %v142 = vsel %vm125, %v113, 0
    %v145 = vsel %vm125, %v114, 0
    %v148 = vsel %vm125, %v115, 0
    %vm150 = vcmask 1043456
    %v152 = vsel %vm150, %v116, 0
    %154 = vmatpush.msra.mxu0 0.0
    %155 = vmatpush.msra.mxu0 0.0
    %156 = vmatpush.msra.mxu0 0.0
    %157 = vmatpush.msra.mxu0 0.0
    %158 = vmatpush.msra.mxu0 0.0
    %159 = vmatpush.msra.mxu0 0.0
    %160 = vmatpush.msra.mxu0 0.0
    %161 = vmatpush.msra.mxu0 0.0
    %162 = vmatpush.msra.mxu0 0.0
    %163 = vmatpush.msra.mxu0 0.0
    %164 = vmatpush.msra.mxu0 0.0
    %165 = vmatpush.msra.mxu0 0.0
    %166 = vmatpush.msra.mxu0 0.0
    %167 = vmatpush.msra.mxu0 0.0
    %168 = vmatpush.msra.mxu0 0.0
    %169 = vmatpush.msra.mxu0 %v152
    %170 = vmatmul.f32.gmra.mxu0 %v127
    %v171 = vpop.f32.mrf.mxu0
    %v172 = vadd.f32 %v123, %v171
    %173 = vmatmul.f32.gmra.mxu0 %v130
    %v174 = vpop.f32.mrf.mxu0
    %v175 = vadd.f32 %v123, %v174
    %176 = vmatmul.f32.gmra.mxu0 %v133
    %v177 = vpop.f32.mrf.mxu0
    %v178 = vadd.f32 %v123, %v177
    %179 = vmatmul.f32.gmra.mxu0 %v136
    %v180 = vpop.f32.mrf.mxu0
    %v181 = vadd.f32 %v123, %v180
    %182 = vmatmul.f32.gmra.mxu0 %v139
    %v183 = vpop.f32.mrf.mxu0
    %v184 = vadd.f32 %v123, %v183
    %185 = vmatmul.f32.gmra.mxu0 %v142
    %v186 = vpop.f32.mrf.mxu0
    %v187 = vadd.f32 %v123, %v186
    %188 = vmatmul.f32.gmra.mxu0 %v145
    %v189 = vpop.f32.mrf.mxu0
    %v190 = vadd.f32 %v123, %v189
    %191 = vmatmul.f32.gmra.mxu0 %v148
    %v192 = vpop.f32.mrf.mxu0
    %v193 = vadd.f32 %v123, %v192
    %194 = vdwg.mxu0
    %vm195 = vcmask 261120
    %v197 = vsel %vm195, 0.0, 0
    %199 = vmatpush.msra.mxu0 0.0
    %200 = vmatpush.msra.mxu0 0.0
    %201 = vmatpush.msra.mxu0 0.0
    %202 = vmatpush.msra.mxu0 0.0
    %203 = vmatpush.msra.mxu0 0.0
    %204 = vmatpush.msra.mxu0 0.0
    %205 = vmatpush.msra.mxu0 0.0
    %206 = vmatpush.msra.mxu0 0.0
    %207 = vmatpush.msra.mxu0 0.0
    %208 = vmatpush.msra.mxu0 0.0
    %209 = vmatpush.msra.mxu0 0.0
    %210 = vmatpush.msra.mxu0 0.0
    %211 = vmatpush.msra.mxu0 %v120
    %212 = vmatpush.msra.mxu0 %v119
    %213 = vmatpush.msra.mxu0 %v118
    %214 = vmatpush.msra.mxu0 %v117
    %215 = vmatmul.f32.gmra.mxu0 %v197
    %v216 = vpop.f32.mrf.mxu0
    %v217 = vadd.f32 0.0, %v216
    %218 = vdwg.mxu0
    %v219 = vadd.f32 %v172, %v217
    %v220 = vxor.u32 %v219, 2147483648
    %v221 = vmul.f32 %v220, 1.442695
    %v222 = vpow.pop %v221
    %v223 = vadd.f32 %v222, 1.0
    %v224 = vrcp.pop %v223
    %v225 = vmul.f32 %v223, %v224
    %v226 = vsub.f32 1.0, %v225
    %v227 = vmul.f32 %v224, %v226
    %v228 = vadd.f32 %v224, %v227
    %vm229 = vweird.f32 %v223
    %vm230 = vweird.f32 %v224
    %vm231 = vmor %vm229, %vm230
    %v232 = vsel %vm231, %v224, %v228
    %v233 = vand.u32 2147483647, %v223
    %vm234 = vcmp.eq.f32.partialorder %v233, 8.507059e+37
    %v235 = vand.u32 %v223, 2147483648
    %v236 = vor.u32 1.1754944e-38, %v235
    %v237 = vsel %vm234, %v236, %v232
    %v238 = vmul.f32 1.0, %v237
    %v239 = vtanh.pop %v219
    %v240 = vmul.f32 %v238, 0.0
    %242 = vrot.lane.b32.xlu0 %v239, 64
    %v243 = vpop.permute.xlu0 %242
    %v245 = vmul.f32 %v238, %v243
    %247 = vrot.lane.b32.xlu0 %v245, 32
    %v248 = vpop.permute.xlu0 %247
    %v250 = vadd.f32 %v240, %v248
    %v251 = vtanh.pop %v250
    %253 = vrot.lane.b32.xlu0 %v251, 64
    %v254 = vpop.permute.xlu0 %253
    %v256 = vmul.f32 %v238, %v254
    %258 = vrot.lane.b32.xlu0 %v256, 32
    %v259 = vpop.permute.xlu0 %258
    %v260 = vsel %vm195, %v259, 0
    %262 = vmatpush.msra.mxu0 0.0
    %263 = vmatpush.msra.mxu0 0.0
    %264 = vmatpush.msra.mxu0 0.0
    %265 = vmatpush.msra.mxu0 0.0
    %266 = vmatpush.msra.mxu0 0.0
    %267 = vmatpush.msra.mxu0 0.0
    %268 = vmatpush.msra.mxu0 0.0
    %269 = vmatpush.msra.mxu0 0.0
    %270 = vmatpush.msra.mxu0 0.0
    %271 = vmatpush.msra.mxu0 0.0
    %272 = vmatpush.msra.mxu0 0.0
    %273 = vmatpush.msra.mxu0 0.0
    %274 = vmatpush.msra.mxu0 %v120
    %275 = vmatpush.msra.mxu0 %v119
    %276 = vmatpush.msra.mxu0 %v118
    %277 = vmatpush.msra.mxu0 %v117
    %278 = vmatmul.f32.gmra.mxu0 %v260
    %v279 = vpop.f32.mrf.mxu0
    %v280 = vadd.f32 0.0, %v279
    %281 = vdwg.mxu0
    %v282 = vadd.f32 %v175, %v280
    %v283 = vxor.u32 %v282, 2147483648
    %v284 = vmul.f32 %v283, 1.442695
    %v285 = vpow.pop %v284
    %v286 = vadd.f32 %v285, 1.0
    %v287 = vrcp.pop %v286
    %v288 = vmul.f32 %v286, %v287
    %v289 = vsub.f32 1.0, %v288
    %v290 = vmul.f32 %v287, %v289
    %v291 = vadd.f32 %v287, %v290
    %vm292 = vweird.f32 %v286
    %vm293 = vweird.f32 %v287
    %vm294 = vmor %vm292, %vm293
    %v295 = vsel %vm294, %v287, %v291
    %v296 = vand.u32 2147483647, %v286
    %vm297 = vcmp.eq.f32.partialorder %v296, 8.507059e+37
    %v298 = vand.u32 %v286, 2147483648
    %v299 = vor.u32 1.1754944e-38, %v298
    %v300 = vsel %vm297, %v299, %v295
    %v301 = vmul.f32 1.0, %v300
    %v302 = vtanh.pop %v282
    %v303 = vmul.f32 %v301, %v250
    %305 = vrot.lane.b32.xlu0 %v302, 64
    %v306 = vpop.permute.xlu0 %305
    %v308 = vmul.f32 %v301, %v306
    %310 = vrot.lane.b32.xlu0 %v308, 32
    %v311 = vpop.permute.xlu0 %310
    %v313 = vadd.f32 %v303, %v311
    %v314 = vtanh.pop %v313
    %316 = vrot.lane.b32.xlu0 %v314, 64
    %v317 = vpop.permute.xlu0 %316
    %v319 = vmul.f32 %v301, %v317
    %321 = vrot.lane.b32.xlu0 %v319, 32
    %v322 = vpop.permute.xlu0 %321
    %v323 = vsel %vm195, %v322, 0
    %325 = vmatpush.msra.mxu0 0.0
    %326 = vmatpush.msra.mxu0 0.0
    %327 = vmatpush.msra.mxu0 0.0
    %328 = vmatpush.msra.mxu0 0.0
    %329 = vmatpush.msra.mxu0 0.0
    %330 = vmatpush.msra.mxu0 0.0
    %331 = vmatpush.msra.mxu0 0.0
    %332 = vmatpush.msra.mxu0 0.0
    %333 = vmatpush.msra.mxu0 0.0
    %334 = vmatpush.msra.mxu0 0.0
    %335 = vmatpush.msra.mxu0 0.0
    %336 = vmatpush.msra.mxu0 0.0
    %337 = vmatpush.msra.mxu0 %v120
    %338 = vmatpush.msra.mxu0 %v119
    %339 = vmatpush.msra.mxu0 %v118
    %340 = vmatpush.msra.mxu0 %v117
    %341 = vmatmul.f32.gmra.mxu0 %v323
    %v342 = vpop.f32.mrf.mxu0
    %v343 = vadd.f32 0.0, %v342
    %344 = vdwg.mxu0
    %v345 = vadd.f32 %v178, %v343
    %v346 = vxor.u32 %v345, 2147483648
    %v347 = vmul.f32 %v346, 1.442695
    %v348 = vpow.pop %v347
    %v349 = vadd.f32 %v348, 1.0
    %v350 = vrcp.pop %v349
    %v351 = vmul.f32 %v349, %v350
    %v352 = vsub.f32 1.0, %v351
    %v353 = vmul.f32 %v350, %v352
    %v354 = vadd.f32 %v350, %v353
    %vm355 = vweird.f32 %v349
    %vm356 = vweird.f32 %v350
    %vm357 = vmor %vm355, %vm356
    %v358 = vsel %vm357, %v350, %v354
    %v359 = vand.u32 2147483647, %v349
    %vm360 = vcmp.eq.f32.partialorder %v359, 8.507059e+37
    %v361 = vand.u32 %v349, 2147483648
    %v362 = vor.u32 1.1754944e-38, %v361
    %v363 = vsel %vm360, %v362, %v358
    %v364 = vmul.f32 1.0, %v363
    %v365 = vtanh.pop %v345
    %v366 = vmul.f32 %v364, %v313
    %368 = vrot.lane.b32.xlu0 %v365, 64
    %v369 = vpop.permute.xlu0 %368
    %v371 = vmul.f32 %v364, %v369
    %373 = vrot.lane.b32.xlu0 %v371, 32
    %v374 = vpop.permute.xlu0 %373
    %v376 = vadd.f32 %v366, %v374
    %v377 = vtanh.pop %v376
    %379 = vrot.lane.b32.xlu0 %v377, 64
    %v380 = vpop.permute.xlu0 %379
    %v382 = vmul.f32 %v364, %v380
    %384 = vrot.lane.b32.xlu0 %v382, 32
    %v385 = vpop.permute.xlu0 %384
    %v386 = vsel %vm195, %v385, 0
    %388 = vmatpush.msra.mxu0 0.0
    %389 = vmatpush.msra.mxu0 0.0
    %390 = vmatpush.msra.mxu0 0.0
    %391 = vmatpush.msra.mxu0 0.0
    %392 = vmatpush.msra.mxu0 0.0
    %393 = vmatpush.msra.mxu0 0.0
    %394 = vmatpush.msra.mxu0 0.0
    %395 = vmatpush.msra.mxu0 0.0
    %396 = vmatpush.msra.mxu0 0.0
    %397 = vmatpush.msra.mxu0 0.0
    %398 = vmatpush.msra.mxu0 0.0
    %399 = vmatpush.msra.mxu0 0.0
    %400 = vmatpush.msra.mxu0 %v120
    %401 = vmatpush.msra.mxu0 %v119
    %402 = vmatpush.msra.mxu0 %v118
    %403 = vmatpush.msra.mxu0 %v117
    %404 = vmatmul.f32.gmra.mxu0 %v386
    %v405 = vpop.f32.mrf.mxu0
    %v406 = vadd.f32 0.0, %v405
    %407 = vdwg.mxu0
    %v408 = vadd.f32 %v181, %v406
    %v409 = vxor.u32 %v408, 2147483648
    %v410 = vmul.f32 %v409, 1.442695
    %v411 = vpow.pop %v410
    %v412 = vadd.f32 %v411, 1.0
    %v413 = vrcp.pop %v412
    %v414 = vmul.f32 %v412, %v413
    %v415 = vsub.f32 1.0, %v414
    %v416 = vmul.f32 %v413, %v415
    %v417 = vadd.f32 %v413, %v416
    %vm418 = vweird.f32 %v412
    %vm419 = vweird.f32 %v413
    %vm420 = vmor %vm418, %vm419
    %v421 = vsel %vm420, %v413, %v417
    %v422 = vand.u32 2147483647, %v412
    %vm423 = vcmp.eq.f32.partialorder %v422, 8.507059e+37
    %v424 = vand.u32 %v412, 2147483648
    %v425 = vor.u32 1.1754944e-38, %v424
    %v426 = vsel %vm423, %v425, %v421
    %v427 = vmul.f32 1.0, %v426
    %v428 = vtanh.pop %v408
    %v429 = vmul.f32 %v427, %v376
    %431 = vrot.lane.b32.xlu0 %v428, 64
    %v432 = vpop.permute.xlu0 %431
    %v434 = vmul.f32 %v427, %v432
    %436 = vrot.lane.b32.xlu0 %v434, 32
    %v437 = vpop.permute.xlu0 %436
    %v439 = vadd.f32 %v429, %v437
    %v440 = vtanh.pop %v439
    %442 = vrot.lane.b32.xlu0 %v440, 64
    %v443 = vpop.permute.xlu0 %442
    %v445 = vmul.f32 %v427, %v443
    %447 = vrot.lane.b32.xlu0 %v445, 32
    %v448 = vpop.permute.xlu0 %447
    %v449 = vsel %vm195, %v448, 0
    %451 = vmatpush.msra.mxu0 0.0
    %452 = vmatpush.msra.mxu0 0.0
    %453 = vmatpush.msra.mxu0 0.0
    %454 = vmatpush.msra.mxu0 0.0
    %455 = vmatpush.msra.mxu0 0.0
    %456 = vmatpush.msra.mxu0 0.0
    %457 = vmatpush.msra.mxu0 0.0
    %458 = vmatpush.msra.mxu0 0.0
    %459 = vmatpush.msra.mxu0 0.0
    %460 = vmatpush.msra.mxu0 0.0
    %461 = vmatpush.msra.mxu0 0.0
    %462 = vmatpush.msra.mxu0 0.0
    %463 = vmatpush.msra.mxu0 %v120
    %464 = vmatpush.msra.mxu0 %v119
    %465 = vmatpush.msra.mxu0 %v118
    %466 = vmatpush.msra.mxu0 %v117
    %467 = vmatmul.f32.gmra.mxu0 %v449
    %v468 = vpop.f32.mrf.mxu0
    %v469 = vadd.f32 0.0, %v468
    %470 = vdwg.mxu0
    %v471 = vadd.f32 %v184, %v469
    %v472 = vxor.u32 %v471, 2147483648
    %v473 = vmul.f32 %v472, 1.442695
    %v474 = vpow.pop %v473
    %v475 = vadd.f32 %v474, 1.0
    %v476 = vrcp.pop %v475
    %v477 = vmul.f32 %v475, %v476
    %v478 = vsub.f32 1.0, %v477
    %v479 = vmul.f32 %v476, %v478
    %v480 = vadd.f32 %v476, %v479
    %vm481 = vweird.f32 %v475
    %vm482 = vweird.f32 %v476
    %vm483 = vmor %vm481, %vm482
    %v484 = vsel %vm483, %v476, %v480
    %v485 = vand.u32 2147483647, %v475
    %vm486 = vcmp.eq.f32.partialorder %v485, 8.507059e+37
    %v487 = vand.u32 %v475, 2147483648
    %v488 = vor.u32 1.1754944e-38, %v487
    %v489 = vsel %vm486, %v488, %v484
    %v490 = vmul.f32 1.0, %v489
    %v491 = vtanh.pop %v471
    %v492 = vmul.f32 %v490, %v439
    %494 = vrot.lane.b32.xlu0 %v491, 64
    %v495 = vpop.permute.xlu0 %494
    %v497 = vmul.f32 %v490, %v495
    %499 = vrot.lane.b32.xlu0 %v497, 32
    %v500 = vpop.permute.xlu0 %499
    %v502 = vadd.f32 %v492, %v500
    %v503 = vtanh.pop %v502
    %505 = vrot.lane.b32.xlu0 %v503, 64
    %v506 = vpop.permute.xlu0 %505
    %v508 = vmul.f32 %v490, %v506
    %510 = vrot.lane.b32.xlu0 %v508, 32
    %v511 = vpop.permute.xlu0 %510
    %v512 = vsel %vm195, %v511, 0
    %514 = vmatpush.msra.mxu0 0.0
    %515 = vmatpush.msra.mxu0 0.0
    %516 = vmatpush.msra.mxu0 0.0
    %517 = vmatpush.msra.mxu0 0.0
    %518 = vmatpush.msra.mxu0 0.0
    %519 = vmatpush.msra.mxu0 0.0
    %520 = vmatpush.msra.mxu0 0.0
    %521 = vmatpush.msra.mxu0 0.0
    %522 = vmatpush.msra.mxu0 0.0
    %523 = vmatpush.msra.mxu0 0.0
    %524 = vmatpush.msra.mxu0 0.0
    %525 = vmatpush.msra.mxu0 0.0
    %526 = vmatpush.msra.mxu0 %v120
    %527 = vmatpush.msra.mxu0 %v119
    %528 = vmatpush.msra.mxu0 %v118
    %529 = vmatpush.msra.mxu0 %v117
    %530 = vmatmul.f32.gmra.mxu0 %v512
    %v531 = vpop.f32.mrf.mxu0
    %v532 = vadd.f32 0.0, %v531
    %533 = vdwg.mxu0
    %v534 = vadd.f32 %v187, %v532
    %v535 = vxor.u32 %v534, 2147483648
    %v536 = vmul.f32 %v535, 1.442695
    %v537 = vpow.pop %v536
    %v538 = vadd.f32 %v537, 1.0
    %v539 = vrcp.pop %v538
    %v540 = vmul.f32 %v538, %v539
    %v541 = vsub.f32 1.0, %v540
    %v542 = vmul.f32 %v539, %v541
    %v543 = vadd.f32 %v539, %v542
    %vm544 = vweird.f32 %v538
    %vm545 = vweird.f32 %v539
    %vm546 = vmor %vm544, %vm545
    %v547 = vsel %vm546, %v539, %v543
    %v548 = vand.u32 2147483647, %v538
    %vm549 = vcmp.eq.f32.partialorder %v548, 8.507059e+37
    %v550 = vand.u32 %v538, 2147483648
    %v551 = vor.u32 1.1754944e-38, %v550
    %v552 = vsel %vm549, %v551, %v547
    %v553 = vmul.f32 1.0, %v552
    %v554 = vtanh.pop %v534
    %v555 = vmul.f32 %v553, %v502
    %557 = vrot.lane.b32.xlu0 %v554, 64
    %v558 = vpop.permute.xlu0 %557
    %v560 = vmul.f32 %v553, %v558
    %562 = vrot.lane.b32.xlu0 %v560, 32
    %v563 = vpop.permute.xlu0 %562
    %v565 = vadd.f32 %v555, %v563
    %v566 = vtanh.pop %v565
    %568 = vrot.lane.b32.xlu0 %v566, 64
    %v569 = vpop.permute.xlu0 %568
    %v571 = vmul.f32 %v553, %v569
    %573 = vrot.lane.b32.xlu0 %v571, 32
    %v574 = vpop.permute.xlu0 %573
    %v575 = vsel %vm195, %v574, 0
    %577 = vmatpush.msra.mxu0 0.0
    %578 = vmatpush.msra.mxu0 0.0
    %579 = vmatpush.msra.mxu0 0.0
    %580 = vmatpush.msra.mxu0 0.0
    %581 = vmatpush.msra.mxu0 0.0
    %582 = vmatpush.msra.mxu0 0.0
    %583 = vmatpush.msra.mxu0 0.0
    %584 = vmatpush.msra.mxu0 0.0
    %585 = vmatpush.msra.mxu0 0.0
    %586 = vmatpush.msra.mxu0 0.0
    %587 = vmatpush.msra.mxu0 0.0
    %588 = vmatpush.msra.mxu0 0.0
    %589 = vmatpush.msra.mxu0 %v120
    %590 = vmatpush.msra.mxu0 %v119
    %591 = vmatpush.msra.mxu0 %v118
    %592 = vmatpush.msra.mxu0 %v117
    %593 = vmatmul.f32.gmra.mxu0 %v575
    %v594 = vpop.f32.mrf.mxu0
    %v595 = vadd.f32 0.0, %v594
    %596 = vdwg.mxu0
    %v597 = vadd.f32 %v190, %v595
    %v598 = vxor.u32 %v597, 2147483648
    %v599 = vmul.f32 %v598, 1.442695
    %v600 = vpow.pop %v599
    %v601 = vadd.f32 %v600, 1.0
    %v602 = vrcp.pop %v601
    %v603 = vmul.f32 %v601, %v602
    %v604 = vsub.f32 1.0, %v603
    %v605 = vmul.f32 %v602, %v604
    %v606 = vadd.f32 %v602, %v605
    %vm607 = vweird.f32 %v601
    %vm608 = vweird.f32 %v602
    %vm609 = vmor %vm607, %vm608
    %v610 = vsel %vm609, %v602, %v606
    %v611 = vand.u32 2147483647, %v601
    %vm612 = vcmp.eq.f32.partialorder %v611, 8.507059e+37
    %v613 = vand.u32 %v601, 2147483648
    %v614 = vor.u32 1.1754944e-38, %v613
    %v615 = vsel %vm612, %v614, %v610
    %v616 = vmul.f32 1.0, %v615
    %v617 = vtanh.pop %v597
    %v618 = vmul.f32 %v616, %v565
    %620 = vrot.lane.b32.xlu0 %v617, 64
    %v621 = vpop.permute.xlu0 %620
    %v623 = vmul.f32 %v616, %v621
    %625 = vrot.lane.b32.xlu0 %v623, 32
    %v626 = vpop.permute.xlu0 %625
    %v628 = vadd.f32 %v618, %v626
    %v629 = vtanh.pop %v628
    %631 = vrot.lane.b32.xlu0 %v629, 64
    %v632 = vpop.permute.xlu0 %631
    %v634 = vmul.f32 %v616, %v632
    %636 = vrot.lane.b32.xlu0 %v634, 32
    %v637 = vpop.permute.xlu0 %636
    %v638 = vsel %vm195, %v637, 0
    %640 = vmatpush.msra.mxu0 0.0
    %641 = vmatpush.msra.mxu0 0.0
    %642 = vmatpush.msra.mxu0 0.0
    %643 = vmatpush.msra.mxu0 0.0
    %644 = vmatpush.msra.mxu0 0.0
    %645 = vmatpush.msra.mxu0 0.0
    %646 = vmatpush.msra.mxu0 0.0
    %647 = vmatpush.msra.mxu0 0.0
    %648 = vmatpush.msra.mxu0 0.0
    %649 = vmatpush.msra.mxu0 0.0
    %650 = vmatpush.msra.mxu0 0.0
    %651 = vmatpush.msra.mxu0 0.0
    %652 = vmatpush.msra.mxu0 %v120
    %653 = vmatpush.msra.mxu0 %v119
    %654 = vmatpush.msra.mxu0 %v118
    %655 = vmatpush.msra.mxu0 %v117
    %656 = vmatmul.f32.gmra.mxu0 %v638
    %v657 = vpop.f32.mrf.mxu0
    %v658 = vadd.f32 0.0, %v657
    %659 = vdwg.mxu0
    %v660 = vadd.f32 %v193, %v658
    %v661 = vxor.u32 %v660, 2147483648
    %v662 = vmul.f32 %v661, 1.442695
    %v663 = vpow.pop %v662
    %v664 = vadd.f32 %v663, 1.0
    %v665 = vrcp.pop %v664
    %v666 = vmul.f32 %v664, %v665
    %v667 = vsub.f32 1.0, %v666
    %v668 = vmul.f32 %v665, %v667
    %v669 = vadd.f32 %v665, %v668
    %vm670 = vweird.f32 %v664
    %vm671 = vweird.f32 %v665
    %vm672 = vmor %vm670, %vm671
    %v673 = vsel %vm672, %v665, %v669
    %v674 = vand.u32 2147483647, %v664
    %vm675 = vcmp.eq.f32.partialorder %v674, 8.507059e+37
    %v676 = vand.u32 %v664, 2147483648
    %v677 = vor.u32 1.1754944e-38, %v676
    %v678 = vsel %vm675, %v677, %v673
    %v679 = vmul.f32 1.0, %v678
    %v680 = vtanh.pop %v660
    %v681 = vmul.f32 %v679, %v628
    %683 = vrot.lane.b32.xlu0 %v680, 64
    %v684 = vpop.permute.xlu0 %683
    %v686 = vmul.f32 %v679, %v684
    %688 = vrot.lane.b32.xlu0 %v686, 32
    %v689 = vpop.permute.xlu0 %688
    %v691 = vadd.f32 %v681, %v689
    %v692 = vtanh.pop %v691
    %694 = vrot.lane.b32.xlu0 %v692, 64
    %v695 = vpop.permute.xlu0 %694
    %v697 = vmul.f32 %v679, %v695
    %v698 = vld [vmem:[%s4] sm:$0xff]
    %v699 = vld [vmem:[%s4 + $0x8] sm:$0xff]
    %v700 = vld [vmem:[%s4 + $0x10] sm:$0xff]
    %v701 = vld [vmem:[%s4 + $0x18] sm:$0xff]
    %v702 = vld [vmem:[#allocation2] sm:$0xff]
    %v703 = vld [vmem:[#allocation2 + $0x8] sm:$0xff]
    %v704 = vld [vmem:[#allocation2 + $0x10] sm:$0xff]
    %v705 = vld [vmem:[#allocation2 + $0x18] sm:$0xff]
    %v706 = vld [vmem:[%s6] sm:$0x1]
    %v708 = vperm.slane %v706, 0
    %711 = vrot.lane.b32.xlu0 %v697, 32
    %v712 = vpop.permute.xlu0 %711
    %v713 = vsel %vm195, %v712, 0
    %715 = vmatpush.msra.mxu0 0.0
    %716 = vmatpush.msra.mxu0 0.0
    %717 = vmatpush.msra.mxu0 0.0
    %718 = vmatpush.msra.mxu0 0.0
    %719 = vmatpush.msra.mxu0 0.0
    %720 = vmatpush.msra.mxu0 0.0
    %721 = vmatpush.msra.mxu0 0.0
    %722 = vmatpush.msra.mxu0 0.0
    %723 = vmatpush.msra.mxu0 0.0
    %724 = vmatpush.msra.mxu0 0.0
    %725 = vmatpush.msra.mxu0 0.0
    %726 = vmatpush.msra.mxu0 0.0
    %727 = vmatpush.msra.mxu0 %v701
    %728 = vmatpush.msra.mxu0 %v700
    %729 = vmatpush.msra.mxu0 %v699
    %730 = vmatpush.msra.mxu0 %v698
    %731 = vmatmul.f32.gmra.mxu0 %v260
    %v732 = vpop.f32.mrf.mxu0
    %v733 = vadd.f32 %v708, %v732
    %734 = vmatmul.f32.gmra.mxu0 %v323
    %v735 = vpop.f32.mrf.mxu0
    %v736 = vadd.f32 %v708, %v735
    %737 = vmatmul.f32.gmra.mxu0 %v386
    %v738 = vpop.f32.mrf.mxu0
    %v739 = vadd.f32 %v708, %v738
    %740 = vmatmul.f32.gmra.mxu0 %v449
    %v741 = vpop.f32.mrf.mxu0
    %v742 = vadd.f32 %v708, %v741
    %743 = vmatmul.f32.gmra.mxu0 %v512
    %v744 = vpop.f32.mrf.mxu0
    %v745 = vadd.f32 %v708, %v744
    %746 = vmatmul.f32.gmra.mxu0 %v575
    %v747 = vpop.f32.mrf.mxu0
    %v748 = vadd.f32 %v708, %v747
    %749 = vmatmul.f32.gmra.mxu0 %v638
    %v750 = vpop.f32.mrf.mxu0
    %v751 = vadd.f32 %v708, %v750
    %752 = vmatmul.f32.gmra.mxu0 %v713
    %v753 = vpop.f32.mrf.mxu0
    %v754 = vadd.f32 %v708, %v753
    %755 = vdwg.mxu0
    %756 = vmatpush.msra.mxu0 0.0
    %757 = vmatpush.msra.mxu0 0.0
    %758 = vmatpush.msra.mxu0 0.0
    %759 = vmatpush.msra.mxu0 0.0
    %760 = vmatpush.msra.mxu0 0.0
    %761 = vmatpush.msra.mxu0 0.0
    %762 = vmatpush.msra.mxu0 0.0
    %763 = vmatpush.msra.mxu0 0.0
    %764 = vmatpush.msra.mxu0 0.0
    %765 = vmatpush.msra.mxu0 0.0
    %766 = vmatpush.msra.mxu0 0.0
    %767 = vmatpush.msra.mxu0 0.0
    %768 = vmatpush.msra.mxu0 %v705
    %769 = vmatpush.msra.mxu0 %v704
    %770 = vmatpush.msra.mxu0 %v703
    %771 = vmatpush.msra.mxu0 %v702
    %772 = vmatmul.f32.gmra.mxu0 %v197
    %v773 = vpop.f32.mrf.mxu0
    %v774 = vadd.f32 0.0, %v773
    %775 = vdwg.mxu0
    %v776 = vadd.f32 %v733, %v774
    %v777 = vxor.u32 %v776, 2147483648
    %v778 = vmul.f32 %v777, 1.442695
    %v779 = vpow.pop %v778
    %v780 = vadd.f32 %v779, 1.0
    %v781 = vrcp.pop %v780
    %v782 = vmul.f32 %v780, %v781
    %v783 = vsub.f32 1.0, %v782
    %v784 = vmul.f32 %v781, %v783
    %v785 = vadd.f32 %v781, %v784
    %vm786 = vweird.f32 %v780
    %vm787 = vweird.f32 %v781
    %vm788 = vmor %vm786, %vm787
    %v789 = vsel %vm788, %v781, %v785
    %v790 = vand.u32 2147483647, %v780
    %vm791 = vcmp.eq.f32.partialorder %v790, 8.507059e+37
    %v792 = vand.u32 %v780, 2147483648
    %v793 = vor.u32 1.1754944e-38, %v792
    %v794 = vsel %vm791, %v793, %v789
    %v795 = vmul.f32 1.0, %v794
    %v796 = vtanh.pop %v776
    %v797 = vmul.f32 %v795, 0.0
    %799 = vrot.lane.b32.xlu0 %v796, 64
    %v800 = vpop.permute.xlu0 %799
    %v802 = vmul.f32 %v795, %v800
    %804 = vrot.lane.b32.xlu0 %v802, 32
    %v805 = vpop.permute.xlu0 %804
    %v807 = vadd.f32 %v797, %v805
    %v808 = vtanh.pop %v807
    %810 = vrot.lane.b32.xlu0 %v808, 64
    %v811 = vpop.permute.xlu0 %810
    %v813 = vmul.f32 %v795, %v811
    %815 = vrot.lane.b32.xlu0 %v813, 32
    %v816 = vpop.permute.xlu0 %815
    %v817 = vsel %vm195, %v816, 0
    %819 = vmatpush.msra.mxu0 0.0
    %820 = vmatpush.msra.mxu0 0.0
    %821 = vmatpush.msra.mxu0 0.0
    %822 = vmatpush.msra.mxu0 0.0
    %823 = vmatpush.msra.mxu0 0.0
    %824 = vmatpush.msra.mxu0 0.0
    %825 = vmatpush.msra.mxu0 0.0
    %826 = vmatpush.msra.mxu0 0.0
    %827 = vmatpush.msra.mxu0 0.0
    %828 = vmatpush.msra.mxu0 0.0
    %829 = vmatpush.msra.mxu0 0.0
    %830 = vmatpush.msra.mxu0 0.0
    %831 = vmatpush.msra.mxu0 %v705
    %832 = vmatpush.msra.mxu0 %v704
    %833 = vmatpush.msra.mxu0 %v703
    %834 = vmatpush.msra.mxu0 %v702
    %835 = vmatmul.f32.gmra.mxu0 %v817
    %v836 = vpop.f32.mrf.mxu0
    %v837 = vadd.f32 0.0, %v836
    %838 = vdwg.mxu0
    %v839 = vadd.f32 %v736, %v837
    %v840 = vxor.u32 %v839, 2147483648
    %v841 = vmul.f32 %v840, 1.442695
    %v842 = vpow.pop %v841
    %v843 = vadd.f32 %v842, 1.0
    %v844 = vrcp.pop %v843
    %v845 = vmul.f32 %v843, %v844
    %v846 = vsub.f32 1.0, %v845
    %v847 = vmul.f32 %v844, %v846
    %v848 = vadd.f32 %v844, %v847
    %vm849 = vweird.f32 %v843
    %vm850 = vweird.f32 %v844
    %vm851 = vmor %vm849, %vm850
    %v852 = vsel %vm851, %v844, %v848
    %v853 = vand.u32 2147483647, %v843
    %vm854 = vcmp.eq.f32.partialorder %v853, 8.507059e+37
    %v855 = vand.u32 %v843, 2147483648
    %v856 = vor.u32 1.1754944e-38, %v855
    %v857 = vsel %vm854, %v856, %v852
    %v858 = vmul.f32 1.0, %v857
    %v859 = vtanh.pop %v839
    %v860 = vmul.f32 %v858, %v807
    %862 = vrot.lane.b32.xlu0 %v859, 64
    %v863 = vpop.permute.xlu0 %862
    %v865 = vmul.f32 %v858, %v863
    %867 = vrot.lane.b32.xlu0 %v865, 32
    %v868 = vpop.permute.xlu0 %867
    %v870 = vadd.f32 %v860, %v868
    %v871 = vtanh.pop %v870
    %873 = vrot.lane.b32.xlu0 %v871, 64
    %v874 = vpop.permute.xlu0 %873
    %v876 = vmul.f32 %v858, %v874
    %878 = vrot.lane.b32.xlu0 %v876, 32
    %v879 = vpop.permute.xlu0 %878
    %v880 = vsel %vm195, %v879, 0
    %882 = vmatpush.msra.mxu0 0.0
    %883 = vmatpush.msra.mxu0 0.0
    %884 = vmatpush.msra.mxu0 0.0
    %885 = vmatpush.msra.mxu0 0.0
    %886 = vmatpush.msra.mxu0 0.0
    %887 = vmatpush.msra.mxu0 0.0
    %888 = vmatpush.msra.mxu0 0.0
    %889 = vmatpush.msra.mxu0 0.0
    %890 = vmatpush.msra.mxu0 0.0
    %891 = vmatpush.msra.mxu0 0.0
    %892 = vmatpush.msra.mxu0 0.0
    %893 = vmatpush.msra.mxu0 0.0
    %894 = vmatpush.msra.mxu0 %v705
    %895 = vmatpush.msra.mxu0 %v704
    %896 = vmatpush.msra.mxu0 %v703
    %897 = vmatpush.msra.mxu0 %v702
    %898 = vmatmul.f32.gmra.mxu0 %v880
    %v899 = vpop.f32.mrf.mxu0
    %v900 = vadd.f32 0.0, %v899
    %901 = vdwg.mxu0
    %v902 = vadd.f32 %v739, %v900
    %v903 = vxor.u32 %v902, 2147483648
    %v904 = vmul.f32 %v903, 1.442695
    %v905 = vpow.pop %v904
    %v906 = vadd.f32 %v905, 1.0
    %v907 = vrcp.pop %v906
    %v908 = vmul.f32 %v906, %v907
    %v909 = vsub.f32 1.0, %v908
    %v910 = vmul.f32 %v907, %v909
    %v911 = vadd.f32 %v907, %v910
    %vm912 = vweird.f32 %v906
    %vm913 = vweird.f32 %v907
    %vm914 = vmor %vm912, %vm913
    %v915 = vsel %vm914, %v907, %v911
    %v916 = vand.u32 2147483647, %v906
    %vm917 = vcmp.eq.f32.partialorder %v916, 8.507059e+37
    %v918 = vand.u32 %v906, 2147483648
    %v919 = vor.u32 1.1754944e-38, %v918
    %v920 = vsel %vm917, %v919, %v915
    %v921 = vmul.f32 1.0, %v920
    %v922 = vtanh.pop %v902
    %v923 = vmul.f32 %v921, %v870
    %925 = vrot.lane.b32.xlu0 %v922, 64
    %v926 = vpop.permute.xlu0 %925
    %v928 = vmul.f32 %v921, %v926
    %930 = vrot.lane.b32.xlu0 %v928, 32
    %v931 = vpop.permute.xlu0 %930
    %v933 = vadd.f32 %v923, %v931
    %v934 = vtanh.pop %v933
    %936 = vrot.lane.b32.xlu0 %v934, 64
    %v937 = vpop.permute.xlu0 %936
    %v939 = vmul.f32 %v921, %v937
    %941 = vrot.lane.b32.xlu0 %v939, 32
    %v942 = vpop.permute.xlu0 %941
    %v943 = vsel %vm195, %v942, 0
    %945 = vmatpush.msra.mxu0 0.0
    %946 = vmatpush.msra.mxu0 0.0
    %947 = vmatpush.msra.mxu0 0.0
    %948 = vmatpush.msra.mxu0 0.0
    %949 = vmatpush.msra.mxu0 0.0
    %950 = vmatpush.msra.mxu0 0.0
    %951 = vmatpush.msra.mxu0 0.0
    %952 = vmatpush.msra.mxu0 0.0
    %953 = vmatpush.msra.mxu0 0.0
    %954 = vmatpush.msra.mxu0 0.0
    %955 = vmatpush.msra.mxu0 0.0
    %956 = vmatpush.msra.mxu0 0.0
    %957 = vmatpush.msra.mxu0 %v705
    %958 = vmatpush.msra.mxu0 %v704
    %959 = vmatpush.msra.mxu0 %v703
    %960 = vmatpush.msra.mxu0 %v702
    %961 = vmatmul.f32.gmra.mxu0 %v943
    %v962 = vpop.f32.mrf.mxu0
    %v963 = vadd.f32 0.0, %v962
    %964 = vdwg.mxu0
    %v965 = vadd.f32 %v742, %v963
    %v966 = vxor.u32 %v965, 2147483648
    %v967 = vmul.f32 %v966, 1.442695
    %v968 = vpow.pop %v967
    %v969 = vadd.f32 %v968, 1.0
    %v970 = vrcp.pop %v969
    %v971 = vmul.f32 %v969, %v970
    %v972 = vsub.f32 1.0, %v971
    %v973 = vmul.f32 %v970, %v972
    %v974 = vadd.f32 %v970, %v973
    %vm975 = vweird.f32 %v969
    %vm976 = vweird.f32 %v970
    %vm977 = vmor %vm975, %vm976
    %v978 = vsel %vm977, %v970, %v974
    %v979 = vand.u32 2147483647, %v969
    %vm980 = vcmp.eq.f32.partialorder %v979, 8.507059e+37
    %v981 = vand.u32 %v969, 2147483648
    %v982 = vor.u32 1.1754944e-38, %v981
    %v983 = vsel %vm980, %v982, %v978
    %v984 = vmul.f32 1.0, %v983
    %v985 = vtanh.pop %v965
    %v986 = vmul.f32 %v984, %v933
    %988 = vrot.lane.b32.xlu0 %v985, 64
    %v989 = vpop.permute.xlu0 %988
    %v991 = vmul.f32 %v984, %v989
    %993 = vrot.lane.b32.xlu0 %v991, 32
    %v994 = vpop.permute.xlu0 %993
    %v996 = vadd.f32 %v986, %v994
    %v997 = vtanh.pop %v996
    %999 = vrot.lane.b32.xlu0 %v997, 64
    %v1000 = vpop.permute.xlu0 %999
    %v1002 = vmul.f32 %v984, %v1000
    %1004 = vrot.lane.b32.xlu0 %v1002, 32
    %v1005 = vpop.permute.xlu0 %1004
    %v1006 = vsel %vm195, %v1005, 0
    %1008 = vmatpush.msra.mxu0 0.0
    %1009 = vmatpush.msra.mxu0 0.0
    %1010 = vmatpush.msra.mxu0 0.0
    %1011 = vmatpush.msra.mxu0 0.0
    %1012 = vmatpush.msra.mxu0 0.0
    %1013 = vmatpush.msra.mxu0 0.0
    %1014 = vmatpush.msra.mxu0 0.0
    %1015 = vmatpush.msra.mxu0 0.0
    %1016 = vmatpush.msra.mxu0 0.0
    %1017 = vmatpush.msra.mxu0 0.0
    %1018 = vmatpush.msra.mxu0 0.0
    %1019 = vmatpush.msra.mxu0 0.0
    %1020 = vmatpush.msra.mxu0 %v705
    %1021 = vmatpush.msra.mxu0 %v704
    %1022 = vmatpush.msra.mxu0 %v703
    %1023 = vmatpush.msra.mxu0 %v702
    %1024 = vmatmul.f32.gmra.mxu0 %v1006
    %v1025 = vpop.f32.mrf.mxu0
    %v1026 = vadd.f32 0.0, %v1025
    %1027 = vdwg.mxu0
    %v1028 = vadd.f32 %v745, %v1026
    %v1029 = vxor.u32 %v1028, 2147483648
    %v1030 = vmul.f32 %v1029, 1.442695
    %v1031 = vpow.pop %v1030
    %v1032 = vadd.f32 %v1031, 1.0
    %v1033 = vrcp.pop %v1032
    %v1034 = vmul.f32 %v1032, %v1033
    %v1035 = vsub.f32 1.0, %v1034
    %v1036 = vmul.f32 %v1033, %v1035
    %v1037 = vadd.f32 %v1033, %v1036
    %vm1038 = vweird.f32 %v1032
    %vm1039 = vweird.f32 %v1033
    %vm1040 = vmor %vm1038, %vm1039
    %v1041 = vsel %vm1040, %v1033, %v1037
    %v1042 = vand.u32 2147483647, %v1032
    %vm1043 = vcmp.eq.f32.partialorder %v1042, 8.507059e+37
    %v1044 = vand.u32 %v1032, 2147483648
    %v1045 = vor.u32 1.1754944e-38, %v1044
    %v1046 = vsel %vm1043, %v1045, %v1041
    %v1047 = vmul.f32 1.0, %v1046
    %v1048 = vtanh.pop %v1028
    %v1049 = vmul.f32 %v1047, %v996
    %1051 = vrot.lane.b32.xlu0 %v1048, 64
    %v1052 = vpop.permute.xlu0 %1051
    %v1054 = vmul.f32 %v1047, %v1052
    %1056 = vrot.lane.b32.xlu0 %v1054, 32
    %v1057 = vpop.permute.xlu0 %1056
    %v1059 = vadd.f32 %v1049, %v1057
    %v1060 = vtanh.pop %v1059
    %1062 = vrot.lane.b32.xlu0 %v1060, 64
    %v1063 = vpop.permute.xlu0 %1062
    %v1065 = vmul.f32 %v1047, %v1063
    %1067 = vrot.lane.b32.xlu0 %v1065, 32
    %v1068 = vpop.permute.xlu0 %1067
    %v1069 = vsel %vm195, %v1068, 0
    %1071 = vmatpush.msra.mxu0 0.0
    %1072 = vmatpush.msra.mxu0 0.0
    %1073 = vmatpush.msra.mxu0 0.0
    %1074 = vmatpush.msra.mxu0 0.0
    %1075 = vmatpush.msra.mxu0 0.0
    %1076 = vmatpush.msra.mxu0 0.0
    %1077 = vmatpush.msra.mxu0 0.0
    %1078 = vmatpush.msra.mxu0 0.0
    %1079 = vmatpush.msra.mxu0 0.0
    %1080 = vmatpush.msra.mxu0 0.0
    %1081 = vmatpush.msra.mxu0 0.0
    %1082 = vmatpush.msra.mxu0 0.0
    %1083 = vmatpush.msra.mxu0 %v705
    %1084 = vmatpush.msra.mxu0 %v704
    %1085 = vmatpush.msra.mxu0 %v703
    %1086 = vmatpush.msra.mxu0 %v702
    %1087 = vmatmul.f32.gmra.mxu0 %v1069
    %v1088 = vpop.f32.mrf.mxu0
    %v1089 = vadd.f32 0.0, %v1088
    %1090 = vdwg.mxu0
    %v1091 = vadd.f32 %v748, %v1089
    %v1092 = vxor.u32 %v1091, 2147483648
    %v1093 = vmul.f32 %v1092, 1.442695
    %v1094 = vpow.pop %v1093
    %v1095 = vadd.f32 %v1094, 1.0
    %v1096 = vrcp.pop %v1095
    %v1097 = vmul.f32 %v1095, %v1096
    %v1098 = vsub.f32 1.0, %v1097
    %v1099 = vmul.f32 %v1096, %v1098
    %v1100 = vadd.f32 %v1096, %v1099
    %vm1101 = vweird.f32 %v1095
    %vm1102 = vweird.f32 %v1096
    %vm1103 = vmor %vm1101, %vm1102
    %v1104 = vsel %vm1103, %v1096, %v1100
    %v1105 = vand.u32 2147483647, %v1095
    %vm1106 = vcmp.eq.f32.partialorder %v1105, 8.507059e+37
    %v1107 = vand.u32 %v1095, 2147483648
    %v1108 = vor.u32 1.1754944e-38, %v1107
    %v1109 = vsel %vm1106, %v1108, %v1104
    %v1110 = vmul.f32 1.0, %v1109
    %v1111 = vtanh.pop %v1091
    %v1112 = vmul.f32 %v1110, %v1059
    %1114 = vrot.lane.b32.xlu0 %v1111, 64
    %v1115 = vpop.permute.xlu0 %1114
    %v1117 = vmul.f32 %v1110, %v1115
    %1119 = vrot.lane.b32.xlu0 %v1117, 32
    %v1120 = vpop.permute.xlu0 %1119
    %v1122 = vadd.f32 %v1112, %v1120
    %v1123 = vtanh.pop %v1122
    %1125 = vrot.lane.b32.xlu0 %v1123, 64
    %v1126 = vpop.permute.xlu0 %1125
    %v1128 = vmul.f32 %v1110, %v1126
    %1130 = vrot.lane.b32.xlu0 %v1128, 32
    %v1131 = vpop.permute.xlu0 %1130
    %v1132 = vsel %vm195, %v1131, 0
    %1134 = vmatpush.msra.mxu0 0.0
    %1135 = vmatpush.msra.mxu0 0.0
    %1136 = vmatpush.msra.mxu0 0.0
    %1137 = vmatpush.msra.mxu0 0.0
    %1138 = vmatpush.msra.mxu0 0.0
    %1139 = vmatpush.msra.mxu0 0.0
    %1140 = vmatpush.msra.mxu0 0.0
    %1141 = vmatpush.msra.mxu0 0.0
    %1142 = vmatpush.msra.mxu0 0.0
    %1143 = vmatpush.msra.mxu0 0.0
    %1144 = vmatpush.msra.mxu0 0.0
    %1145 = vmatpush.msra.mxu0 0.0
    %1146 = vmatpush.msra.mxu0 %v705
    %1147 = vmatpush.msra.mxu0 %v704
    %1148 = vmatpush.msra.mxu0 %v703
    %1149 = vmatpush.msra.mxu0 %v702
    %1150 = vmatmul.f32.gmra.mxu0 %v1132
    %v1151 = vpop.f32.mrf.mxu0
    %v1152 = vadd.f32 0.0, %v1151
    %1153 = vdwg.mxu0
    %v1154 = vadd.f32 %v751, %v1152
    %v1155 = vxor.u32 %v1154, 2147483648
    %v1156 = vmul.f32 %v1155, 1.442695
    %v1157 = vpow.pop %v1156
    %v1158 = vadd.f32 %v1157, 1.0
    %v1159 = vrcp.pop %v1158
    %v1160 = vmul.f32 %v1158, %v1159
    %v1161 = vsub.f32 1.0, %v1160
    %v1162 = vmul.f32 %v1159, %v1161
    %v1163 = vadd.f32 %v1159, %v1162
    %vm1164 = vweird.f32 %v1158
    %vm1165 = vweird.f32 %v1159
    %vm1166 = vmor %vm1164, %vm1165
    %v1167 = vsel %vm1166, %v1159, %v1163
    %v1168 = vand.u32 2147483647, %v1158
    %vm1169 = vcmp.eq.f32.partialorder %v1168, 8.507059e+37
    %v1170 = vand.u32 %v1158, 2147483648
    %v1171 = vor.u32 1.1754944e-38, %v1170
    %v1172 = vsel %vm1169, %v1171, %v1167
    %v1173 = vmul.f32 1.0, %v1172
    %v1174 = vtanh.pop %v1154
    %v1175 = vmul.f32 %v1173, %v1122
    %1177 = vrot.lane.b32.xlu0 %v1174, 64
    %v1178 = vpop.permute.xlu0 %1177
    %v1180 = vmul.f32 %v1173, %v1178
    %1182 = vrot.lane.b32.xlu0 %v1180, 32
    %v1183 = vpop.permute.xlu0 %1182
    %v1185 = vadd.f32 %v1175, %v1183
    %v1186 = vtanh.pop %v1185
    %1188 = vrot.lane.b32.xlu0 %v1186, 64
    %v1189 = vpop.permute.xlu0 %1188
    %v1191 = vmul.f32 %v1173, %v1189
    %1193 = vrot.lane.b32.xlu0 %v1191, 32
    %v1194 = vpop.permute.xlu0 %1193
    %v1195 = vsel %vm195, %v1194, 0
    %1197 = vmatpush.msra.mxu0 0.0
    %1198 = vmatpush.msra.mxu0 0.0
    %1199 = vmatpush.msra.mxu0 0.0
    %1200 = vmatpush.msra.mxu0 0.0
    %1201 = vmatpush.msra.mxu0 0.0
    %1202 = vmatpush.msra.mxu0 0.0
    %1203 = vmatpush.msra.mxu0 0.0
    %1204 = vmatpush.msra.mxu0 0.0
    %1205 = vmatpush.msra.mxu0 0.0
    %1206 = vmatpush.msra.mxu0 0.0
    %1207 = vmatpush.msra.mxu0 0.0
    %1208 = vmatpush.msra.mxu0 0.0
    %1209 = vmatpush.msra.mxu0 %v705
    %1210 = vmatpush.msra.mxu0 %v704
    %1211 = vmatpush.msra.mxu0 %v703
    %1212 = vmatpush.msra.mxu0 %v702
    %1213 = vmatmul.f32.gmra.mxu0 %v1195
    %v1214 = vpop.f32.mrf.mxu0
    %v1215 = vadd.f32 0.0, %v1214
    %1216 = vdwg.mxu0
    %v1217 = vadd.f32 %v754, %v1215
    %v1218 = vxor.u32 %v1217, 2147483648
    %v1219 = vmul.f32 %v1218, 1.442695
    %v1220 = vpow.pop %v1219
    %v1221 = vadd.f32 %v1220, 1.0
    %v1222 = vrcp.pop %v1221
    %v1223 = vmul.f32 %v1221, %v1222
    %v1224 = vsub.f32 1.0, %v1223
    %v1225 = vmul.f32 %v1222, %v1224
    %v1226 = vadd.f32 %v1222, %v1225
    %vm1227 = vweird.f32 %v1221
    %vm1228 = vweird.f32 %v1222
    %vm1229 = vmor %vm1227, %vm1228
    %v1230 = vsel %vm1229, %v1222, %v1226
    %v1231 = vand.u32 2147483647, %v1221
    %vm1232 = vcmp.eq.f32.partialorder %v1231, 8.507059e+37
    %v1233 = vand.u32 %v1221, 2147483648
    %v1234 = vor.u32 1.1754944e-38, %v1233
    %v1235 = vsel %vm1232, %v1234, %v1230
    %v1236 = vmul.f32 1.0, %v1235
    %v1237 = vtanh.pop %v1217
    %v1238 = vmul.f32 %v1236, %v1185
    %1240 = vrot.lane.b32.xlu0 %v1237, 64
    %v1241 = vpop.permute.xlu0 %1240
    %v1243 = vmul.f32 %v1236, %v1241
    %1245 = vrot.lane.b32.xlu0 %v1243, 32
    %v1246 = vpop.permute.xlu0 %1245
    %v1248 = vadd.f32 %v1238, %v1246
    %v1249 = vtanh.pop %v1248
    %1251 = vrot.lane.b32.xlu0 %v1249, 64
    %v1252 = vpop.permute.xlu0 %1251
    %v1254 = vmul.f32 %v1236, %v1252
    %v1255 = vld [vmem:[#allocation5] sm:$0xff]
    %v1256 = vld [vmem:[#allocation5 + $0x8] sm:$0xff]
    %v1257 = vld [vmem:[#allocation5 + $0x10] sm:$0xff]
    %v1258 = vld [vmem:[#allocation5 + $0x18] sm:$0xff]
    %v1259 = vld [vmem:[%s8] sm:$0x1]
    %v1261 = vperm.slane %v1259, 0
    %1264 = vrot.lane.b32.xlu0 %v1254, 32
    %v1265 = vpop.permute.xlu0 %1264
    %v1266 = vsel %vm195, %v1265, 0
    %1268 = vmatpush.msra.mxu0 0.0
    %1269 = vmatpush.msra.mxu0 0.0
    %1270 = vmatpush.msra.mxu0 0.0
    %1271 = vmatpush.msra.mxu0 0.0
    %1272 = vmatpush.msra.mxu0 0.0
    %1273 = vmatpush.msra.mxu0 0.0
    %1274 = vmatpush.msra.mxu0 0.0
    %1275 = vmatpush.msra.mxu0 0.0
    %1276 = vmatpush.msra.mxu0 0.0
    %1277 = vmatpush.msra.mxu0 0.0
    %1278 = vmatpush.msra.mxu0 0.0
    %1279 = vmatpush.msra.mxu0 0.0
    %1280 = vmatpush.msra.mxu0 %v1258
    %1281 = vmatpush.msra.mxu0 %v1257
    %1282 = vmatpush.msra.mxu0 %v1256
    %1283 = vmatpush.msra.mxu0 %v1255
    %1284 = vmatmul.f32.gmra.mxu0 %v817
    %v1285 = vpop.f32.mrf.mxu0
    %v1286 = vadd.f32 %v1261, %v1285
    %1287 = vmatmul.f32.gmra.mxu0 %v880
    %v1288 = vpop.f32.mrf.mxu0
    %v1289 = vadd.f32 %v1261, %v1288
    %1290 = vmatmul.f32.gmra.mxu0 %v943
    %v1291 = vpop.f32.mrf.mxu0
    %v1292 = vadd.f32 %v1261, %v1291
    %1293 = vmatmul.f32.gmra.mxu0 %v1006
    %v1294 = vpop.f32.mrf.mxu0
    %v1295 = vadd.f32 %v1261, %v1294
    %1296 = vmatmul.f32.gmra.mxu0 %v1069
    %v1297 = vpop.f32.mrf.mxu0
    %v1298 = vadd.f32 %v1261, %v1297
    %1299 = vmatmul.f32.gmra.mxu0 %v1132
    %v1300 = vpop.f32.mrf.mxu0
    %v1301 = vadd.f32 %v1261, %v1300
    %1302 = vmatmul.f32.gmra.mxu0 %v1195
    %v1303 = vpop.f32.mrf.mxu0
    %v1304 = vadd.f32 %v1261, %v1303
    %1305 = vmatmul.f32.gmra.mxu0 %v1266
    %v1306 = vpop.f32.mrf.mxu0
    %v1307 = vadd.f32 %v1261, %v1306
    %1308 = vdwg.mxu0
    %v1309 = vmax.f32 %v1286, 0.0
    %v1310 = vmax.f32 %v1289, 0.0
    %v1311 = vmax.f32 %v1292, 0.0
    %v1312 = vmax.f32 %v1295, 0.0
    %v1313 = vmax.f32 %v1298, 0.0
    %v1314 = vmax.f32 %v1301, 0.0
    %v1315 = vmax.f32 %v1304, 0.0
    %v1316 = vmax.f32 %v1307, 0.0
    %v1317 = vld [vmem:[#allocation7] sm:$0xff]
    %v1318 = vld [vmem:[#allocation7 + $0x8] sm:$0xff]
    %v1319 = vld [vmem:[#allocation7 + $0x10] sm:$0xff]
    %v1320 = vld [vmem:[#allocation7 + $0x18] sm:$0xff]
    %v1321 = vld [vmem:[#allocation7 + $0x20] sm:$0xff]
    %v1322 = vld [vmem:[#allocation7 + $0x28] sm:$0xff]
    %v1323 = vld [vmem:[#allocation7 + $0x30] sm:$0xff]
    %v1324 = vld [vmem:[#allocation7 + $0x38] sm:$0xff]
    %v1325 = vld [vmem:[#allocation7 + $0x40] sm:$0xff]
    %v1326 = vld [vmem:[#allocation7 + $0x48] sm:$0xff]
    %v1327 = vld [vmem:[#allocation7 + $0x50] sm:$0xff]
    %v1328 = vld [vmem:[#allocation7 + $0x58] sm:$0xff]
    %v1329 = vld [vmem:[#allocation7 + $0x60] sm:$0xff]
    %v1330 = vld [vmem:[#allocation7 + $0x68] sm:$0xff]
    %v1331 = vld [vmem:[#allocation7 + $0x70] sm:$0xff]
    %v1332 = vld [vmem:[#allocation7 + $0x78] sm:$0xff]
    %v1333 = vld [vmem:[%s10] sm:$0x1]
    %v1335 = vperm.slane %v1333, 0
    %1337 = vmatpush.msra.mxu0 %v1332
    %1338 = vmatpush.msra.mxu0 %v1331
    %1339 = vmatpush.msra.mxu0 %v1330
    %1340 = vmatpush.msra.mxu0 %v1329
    %1341 = vmatpush.msra.mxu0 %v1328
    %1342 = vmatpush.msra.mxu0 %v1327
    %1343 = vmatpush.msra.mxu0 %v1326
    %1344 = vmatpush.msra.mxu0 %v1325
    %1345 = vmatpush.msra.mxu0 %v1324
    %1346 = vmatpush.msra.mxu0 %v1323
    %1347 = vmatpush.msra.mxu0 %v1322
    %1348 = vmatpush.msra.mxu0 %v1321
    %1349 = vmatpush.msra.mxu0 %v1320
    %1350 = vmatpush.msra.mxu0 %v1319
    %1351 = vmatpush.msra.mxu0 %v1318
    %1352 = vmatpush.msra.mxu0 %v1317
    %1353 = vmatmul.f32.gmra.mxu0 %v1309
    %v1354 = vpop.f32.mrf.mxu0
    %v1355 = vadd.f32 %v1335, %v1354
    %1356 = vmatmul.f32.gmra.mxu0 %v1310
    %v1357 = vpop.f32.mrf.mxu0
    %v1358 = vadd.f32 %v1335, %v1357
    %1359 = vmatmul.f32.gmra.mxu0 %v1311
    %v1360 = vpop.f32.mrf.mxu0
    %v1361 = vadd.f32 %v1335, %v1360
    %1362 = vmatmul.f32.gmra.mxu0 %v1312
    %v1363 = vpop.f32.mrf.mxu0
    %v1364 = vadd.f32 %v1335, %v1363
    %1365 = vmatmul.f32.gmra.mxu0 %v1313
    %v1366 = vpop.f32.mrf.mxu0
    %v1367 = vadd.f32 %v1335, %v1366
    %1368 = vmatmul.f32.gmra.mxu0 %v1314
    %v1369 = vpop.f32.mrf.mxu0
    %v1370 = vadd.f32 %v1335, %v1369
    %1371 = vmatmul.f32.gmra.mxu0 %v1315
    %v1372 = vpop.f32.mrf.mxu0
    %v1373 = vadd.f32 %v1335, %v1372
    %1374 = vmatmul.f32.gmra.mxu0 %v1316
    %v1375 = vpop.f32.mrf.mxu0
    %v1376 = vadd.f32 %v1335, %v1375
    %1377 = vdwg.mxu0
    %v1378 = vmax.f32 %v1355, 0.0
    %v1379 = vmax.f32 %v1358, 0.0
    %v1380 = vmax.f32 %v1361, 0.0
    %v1381 = vmax.f32 %v1364, 0.0
    %v1382 = vmax.f32 %v1367, 0.0
    %v1383 = vmax.f32 %v1370, 0.0
    %v1384 = vmax.f32 %v1373, 0.0
    %v1385 = vmax.f32 %v1376, 0.0
    %v1386 = vld [vmem:[#allocation8] sm:$0xff]
    %v1387 = vld [vmem:[#allocation8 + $0x8] sm:$0xff]
    %v1388 = vld [vmem:[#allocation8 + $0x10] sm:$0xff]
    %v1389 = vld [vmem:[#allocation8 + $0x18] sm:$0xff]
    %v1390 = vld [vmem:[#allocation8 + $0x20] sm:$0xff]
    %v1391 = vld [vmem:[#allocation8 + $0x28] sm:$0xff]
    %v1392 = vld [vmem:[#allocation8 + $0x30] sm:$0xff]
    %v1393 = vld [vmem:[#allocation8 + $0x38] sm:$0xff]
    %v1394 = vld [vmem:[#allocation8 + $0x40] sm:$0xff]
    %v1395 = vld [vmem:[#allocation8 + $0x48] sm:$0xff]
    %v1396 = vld [vmem:[#allocation8 + $0x50] sm:$0xff]
    %v1397 = vld [vmem:[#allocation8 + $0x58] sm:$0xff]
    %v1398 = vld [vmem:[#allocation8 + $0x60] sm:$0xff]
    %v1399 = vld [vmem:[#allocation8 + $0x68] sm:$0xff]
    %v1400 = vld [vmem:[#allocation8 + $0x70] sm:$0xff]
    %v1401 = vld [vmem:[#allocation8 + $0x78] sm:$0xff]
    %v1402 = vld [vmem:[%s12] sm:$0x1]
    %v1404 = vperm.slane %v1402, 0
    %1406 = vmatpush.msra.mxu0 %v1401
    %1407 = vmatpush.msra.mxu0 %v1400
    %1408 = vmatpush.msra.mxu0 %v1399
    %1409 = vmatpush.msra.mxu0 %v1398
    %1410 = vmatpush.msra.mxu0 %v1397
    %1411 = vmatpush.msra.mxu0 %v1396
    %1412 = vmatpush.msra.mxu0 %v1395
    %1413 = vmatpush.msra.mxu0 %v1394
    %1414 = vmatpush.msra.mxu0 %v1393
    %1415 = vmatpush.msra.mxu0 %v1392
    %1416 = vmatpush.msra.mxu0 %v1391
    %1417 = vmatpush.msra.mxu0 %v1390
    %1418 = vmatpush.msra.mxu0 %v1389
    %1419 = vmatpush.msra.mxu0 %v1388
    %1420 = vmatpush.msra.mxu0 %v1387
    %1421 = vmatpush.msra.mxu0 %v1386
    %1422 = vmatmul.f32.gmra.mxu0 %v1378
    %v1423 = vpop.f32.mrf.mxu0
    %v1424 = vadd.f32 %v1404, %v1423
    %1425 = vmatmul.f32.gmra.mxu0 %v1379
    %v1426 = vpop.f32.mrf.mxu0
    %v1427 = vadd.f32 %v1404, %v1426
    %1428 = vmatmul.f32.gmra.mxu0 %v1380
    %v1429 = vpop.f32.mrf.mxu0
    %v1430 = vadd.f32 %v1404, %v1429
    %1431 = vmatmul.f32.gmra.mxu0 %v1381
    %v1432 = vpop.f32.mrf.mxu0
    %v1433 = vadd.f32 %v1404, %v1432
    %1434 = vmatmul.f32.gmra.mxu0 %v1382
    %v1435 = vpop.f32.mrf.mxu0
    %v1436 = vadd.f32 %v1404, %v1435
    %1437 = vmatmul.f32.gmra.mxu0 %v1383
    %v1438 = vpop.f32.mrf.mxu0
    %v1439 = vadd.f32 %v1404, %v1438
    %1440 = vmatmul.f32.gmra.mxu0 %v1384
    %v1441 = vpop.f32.mrf.mxu0
    %v1442 = vadd.f32 %v1404, %v1441
    %1443 = vmatmul.f32.gmra.mxu0 %v1385
    %v1444 = vpop.f32.mrf.mxu0
    %v1445 = vadd.f32 %v1404, %v1444
    %1446 = vdwg.mxu0
    %v1447 = vxor.u32 %v1424, 2147483648
    %v1448 = vxor.u32 %v1427, 2147483648
    %v1449 = vxor.u32 %v1430, 2147483648
    %v1450 = vxor.u32 %v1433, 2147483648
    %v1451 = vxor.u32 %v1436, 2147483648
    %v1452 = vxor.u32 %v1439, 2147483648
    %v1453 = vxor.u32 %v1442, 2147483648
    %v1454 = vxor.u32 %v1445, 2147483648
    %v1455 = vmul.f32 %v1447, 1.442695
    %v1456 = vpow.pop %v1455
    %v1457 = vmul.f32 %v1448, 1.442695
    %v1458 = vpow.pop %v1457
    %v1459 = vmul.f32 %v1449, 1.442695
    %v1460 = vpow.pop %v1459
    %v1461 = vmul.f32 %v1450, 1.442695
    %v1462 = vpow.pop %v1461
    %v1463 = vmul.f32 %v1451, 1.442695
    %v1464 = vpow.pop %v1463
    %v1465 = vmul.f32 %v1452, 1.442695
    %v1466 = vpow.pop %v1465
    %v1467 = vmul.f32 %v1453, 1.442695
    %v1468 = vpow.pop %v1467
    %v1469 = vmul.f32 %v1454, 1.442695
    %v1470 = vpow.pop %v1469
    %v1471 = vadd.f32 %v1456, 1.0
    %v1472 = vadd.f32 %v1458, 1.0
    %v1473 = vadd.f32 %v1460, 1.0
    %v1474 = vadd.f32 %v1462, 1.0
    %v1475 = vadd.f32 %v1464, 1.0
    %v1476 = vadd.f32 %v1466, 1.0
    %v1477 = vadd.f32 %v1468, 1.0
    %v1478 = vadd.f32 %v1470, 1.0
    %v1479 = vrcp.pop %v1471
    %v1480 = vmul.f32 %v1471, %v1479
    %v1481 = vsub.f32 1.0, %v1480
    %v1482 = vmul.f32 %v1479, %v1481
    %v1483 = vadd.f32 %v1479, %v1482
    %vm1484 = vweird.f32 %v1471
    %vm1485 = vweird.f32 %v1479
    %vm1486 = vmor %vm1484, %vm1485
    %v1487 = vsel %vm1486, %v1479, %v1483
    %v1488 = vand.u32 2147483647, %v1471
    %vm1489 = vcmp.eq.f32.partialorder %v1488, 8.507059e+37
    %v1490 = vand.u32 %v1471, 2147483648
    %v1491 = vor.u32 1.1754944e-38, %v1490
    %v1492 = vsel %vm1489, %v1491, %v1487
    %v1493 = vmul.f32 1.0, %v1492
    %v1494 = vrcp.pop %v1472
    %v1495 = vmul.f32 %v1472, %v1494
    %v1496 = vsub.f32 1.0, %v1495
    %v1497 = vmul.f32 %v1494, %v1496
    %v1498 = vadd.f32 %v1494, %v1497
    %vm1499 = vweird.f32 %v1472
    %vm1500 = vweird.f32 %v1494
    %vm1501 = vmor %vm1499, %vm1500
    %v1502 = vsel %vm1501, %v1494, %v1498
    %v1503 = vand.u32 2147483647, %v1472
    %vm1504 = vcmp.eq.f32.partialorder %v1503, 8.507059e+37
    %v1505 = vand.u32 %v1472, 2147483648
    %v1506 = vor.u32 1.1754944e-38, %v1505
    %v1507 = vsel %vm1504, %v1506, %v1502
    %v1508 = vmul.f32 1.0, %v1507
    %v1509 = vrcp.pop %v1473
    %v1510 = vmul.f32 %v1473, %v1509
    %v1511 = vsub.f32 1.0, %v1510
    %v1512 = vmul.f32 %v1509, %v1511
    %v1513 = vadd.f32 %v1509, %v1512
    %vm1514 = vweird.f32 %v1473
    %vm1515 = vweird.f32 %v1509
    %vm1516 = vmor %vm1514, %vm1515
    %v1517 = vsel %vm1516, %v1509, %v1513
    %v1518 = vand.u32 2147483647, %v1473
    %vm1519 = vcmp.eq.f32.partialorder %v1518, 8.507059e+37
    %v1520 = vand.u32 %v1473, 2147483648
    %v1521 = vor.u32 1.1754944e-38, %v1520
    %v1522 = vsel %vm1519, %v1521, %v1517
    %v1523 = vmul.f32 1.0, %v1522
    %v1524 = vrcp.pop %v1474
    %v1525 = vmul.f32 %v1474, %v1524
    %v1526 = vsub.f32 1.0, %v1525
    %v1527 = vmul.f32 %v1524, %v1526
    %v1528 = vadd.f32 %v1524, %v1527
    %vm1529 = vweird.f32 %v1474
    %vm1530 = vweird.f32 %v1524
    %vm1531 = vmor %vm1529, %vm1530
    %v1532 = vsel %vm1531, %v1524, %v1528
    %v1533 = vand.u32 2147483647, %v1474
    %vm1534 = vcmp.eq.f32.partialorder %v1533, 8.507059e+37
    %v1535 = vand.u32 %v1474, 2147483648
    %v1536 = vor.u32 1.1754944e-38, %v1535
    %v1537 = vsel %vm1534, %v1536, %v1532
    %v1538 = vmul.f32 1.0, %v1537
    %v1539 = vrcp.pop %v1475
    %v1540 = vmul.f32 %v1475, %v1539
    %v1541 = vsub.f32 1.0, %v1540
    %v1542 = vmul.f32 %v1539, %v1541
    %v1543 = vadd.f32 %v1539, %v1542
    %vm1544 = vweird.f32 %v1475
    %vm1545 = vweird.f32 %v1539
    %vm1546 = vmor %vm1544, %vm1545
    %v1547 = vsel %vm1546, %v1539, %v1543
    %v1548 = vand.u32 2147483647, %v1475
    %vm1549 = vcmp.eq.f32.partialorder %v1548, 8.507059e+37
    %v1550 = vand.u32 %v1475, 2147483648
    %v1551 = vor.u32 1.1754944e-38, %v1550
    %v1552 = vsel %vm1549, %v1551, %v1547
    %v1553 = vmul.f32 1.0, %v1552
    %v1554 = vrcp.pop %v1476
    %v1555 = vmul.f32 %v1476, %v1554
    %v1556 = vsub.f32 1.0, %v1555
    %v1557 = vmul.f32 %v1554, %v1556
    %v1558 = vadd.f32 %v1554, %v1557
    %vm1559 = vweird.f32 %v1476
    %vm1560 = vweird.f32 %v1554
    %vm1561 = vmor %vm1559, %vm1560
    %v1562 = vsel %vm1561, %v1554, %v1558
    %v1563 = vand.u32 2147483647, %v1476
    %vm1564 = vcmp.eq.f32.partialorder %v1563, 8.507059e+37
    %v1565 = vand.u32 %v1476, 2147483648
    %v1566 = vor.u32 1.1754944e-38, %v1565
    %v1567 = vsel %vm1564, %v1566, %v1562
    %v1568 = vmul.f32 1.0, %v1567
    %v1569 = vrcp.pop %v1477
    %v1570 = vmul.f32 %v1477, %v1569
    %v1571 = vsub.f32 1.0, %v1570
    %v1572 = vmul.f32 %v1569, %v1571
    %v1573 = vadd.f32 %v1569, %v1572
    %vm1574 = vweird.f32 %v1477
    %vm1575 = vweird.f32 %v1569
    %vm1576 = vmor %vm1574, %vm1575
    %v1577 = vsel %vm1576, %v1569, %v1573
    %v1578 = vand.u32 2147483647, %v1477
    %vm1579 = vcmp.eq.f32.partialorder %v1578, 8.507059e+37
    %v1580 = vand.u32 %v1477, 2147483648
    %v1581 = vor.u32 1.1754944e-38, %v1580
    %v1582 = vsel %vm1579, %v1581, %v1577
    %v1583 = vmul.f32 1.0, %v1582
    %v1584 = vrcp.pop %v1478
    %v1585 = vmul.f32 %v1478, %v1584
    %v1586 = vsub.f32 1.0, %v1585
    %v1587 = vmul.f32 %v1584, %v1586
    %v1588 = vadd.f32 %v1584, %v1587
    %vm1589 = vweird.f32 %v1478
    %vm1590 = vweird.f32 %v1584
    %vm1591 = vmor %vm1589, %vm1590
    %v1592 = vsel %vm1591, %v1584, %v1588
    %v1593 = vand.u32 2147483647, %v1478
    %vm1594 = vcmp.eq.f32.partialorder %v1593, 8.507059e+37
    %v1595 = vand.u32 %v1478, 2147483648
    %v1596 = vor.u32 1.1754944e-38, %v1595
    %v1597 = vsel %vm1594, %v1596, %v1592
    %v1598 = vmul.f32 1.0, %v1597
    %1599 = vst [vmem:[#allocation10] sm:$0xff] %v1493
    %1600 = vst [vmem:[#allocation10 + $0x8] sm:$0xff] %v1508
    %1601 = vst [vmem:[#allocation10 + $0x10] sm:$0xff] %v1523
    %1602 = vst [vmem:[#allocation10 + $0x18] sm:$0xff] %v1538
    %1603 = vst [vmem:[#allocation10 + $0x20] sm:$0xff] %v1553
    %1604 = vst [vmem:[#allocation10 + $0x28] sm:$0xff] %v1568
    %1605 = vst [vmem:[#allocation10 + $0x30] sm:$0xff] %v1583
    %1606 = vst [vmem:[#allocation10 + $0x38] sm:$0xff] %v1598
    // Predicated region
    $region70: #{tpu_custom_call.1} parent=1 // pred_check
      _
    $region71: #{tpu_custom_call.1} parent=1 // pred_check_branch
      %1608 = sbr.rel (0) target = $region73
    $region72: #{tpu_custom_call.1} parent=1 // pred_region
      %1610 = vsyncadd [#allocation4], 0
      %s1611 = sshll.u32 [#allocation10], 4
      %s1612 = int_to_ptr.vmem [resolvable:$true] %s1611
      %s1613 = sshll.u32 %s13, 4
      %s1614 = int_to_ptr.hbm [resolvable:$true] %s1613
      %1619 = dma.vmem_to_hbm [thread:$0]  %s1612, 1024, %s1614, [#allocation4], 128, 128, 8
    $region73: #{tpu_custom_call.1} parent=1 // pred_fallthru
      _
    // Predicated region
    $region74: #{tpu_custom_call.1} parent=1 // pred_check
      _
    $region75: #{tpu_custom_call.1} parent=1 // pred_check_branch
      %1621 = sbr.rel (0) target = $region77
    $region76: #{tpu_custom_call.1} parent=1 // pred_region
      %1623 = dma.done [#allocation4], 1024
    $region77: #{tpu_custom_call.1} parent=1 // pred_fallthru
      _
    %1624 = vsyncpa [#allocation3], 1
    %1625 = vsyncpa [#allocation6], 1
    %1626 = vsyncpa [#allocation9], 1
    %1627 = vsyncpa [#allocation4], 1

</llo_original>
